<compile_context>
chip_gen: v5e
topology: v5e:2x2
jax: 0.10.0
libtpu: 0.0.40
codegen_flags: <defaults>
</compile_context>

<pallas_src>
import math
import functools

import numpy as np
import jax
import jax.numpy as jnp
from jax.experimental import pallas as pl
from jax.experimental.pallas import tpu as pltpu


def _layernorm(x, w, b, eps=1e-5):
    mu = jnp.mean(x, axis=-1, keepdims=True)
    var = jnp.mean((x - mu) ** 2, axis=-1, keepdims=True)
    return (x - mu) * jax.lax.rsqrt(var + eps) * w + b


# ----------------------------------------------------------------------------
# Pallas kernel: 2-layer encoder stack for a block of Bt sequences per grid step.
# ----------------------------------------------------------------------------
def encoder_kernel(
    h0_ref,              # (Bt, S, D)  compute_dtype  embedded input (linear_in + pos)
    wqkv_ref, bqkv_ref,  # (L, D, 3D) compute_dtype, (L, 1, 3D) f32  fused qkv projection
    wo_ref, bo_ref,      # (L, D, D)  compute_dtype, (L, 1, D)  f32  out_proj
    w1_ref, b1_ref,      # (L, D, FF) compute_dtype, (L, 1, FF) f32  linear1
    w2_ref, b2_ref,      # (L, FF, D) compute_dtype, (L, 1, D)  f32  linear2
    n1w_ref, n1b_ref,    # (L, 1, D) f32
    n2w_ref, n2b_ref,    # (L, 1, D) f32
    o_ref,               # (Bt, D) f32   last-token hidden state (lane-dense, no size-1 dim)
    *,
    nlayers,
    nhead,
):
    Bt, S, D = h0_ref.shape
    HD = D // nhead
    N = Bt * S
    scale = 1.0 / math.sqrt(HD)
    cdt = h0_ref.dtype  # matmul-operand dtype (bf16 in the perf config)

    # stack batch+seq rows: every dense matmul below sees M = Bt*S
    h = h0_ref[...].reshape(N, D)                    # compute_dtype
    hf = h.astype(jnp.float32)                       # f32 running residual stream

    for l in range(nlayers):
        # ---- multi-head self attention: ONE full-width fused qkv matmul per layer ----
        qkv = jnp.dot(h, wqkv_ref[l], preferred_element_type=jnp.float32) + bqkv_ref[l]  # (N,3D) f32
        qkv_c = qkv.astype(cdt)

        # heads are contiguous HD lane slices of q / k / v (PyTorch layout); only the
        # intrinsically per-head score / pv einsums run at HD granularity.
        ctx = []
        for hh in range(nhead):
            q3 = qkv_c[:, hh * HD:(hh + 1) * HD].reshape(Bt, S, HD)
            k3 = qkv_c[:, D + hh * HD:D + (hh + 1) * HD].reshape(Bt, S, HD)
            v3 = qkv_c[:, 2 * D + hh * HD:2 * D + (hh + 1) * HD].reshape(Bt, S, HD)
            sc = jnp.einsum("bqd,bkd->bqk", q3, k3,
                            preferred_element_type=jnp.float32) * scale
            sc = sc - jnp.max(sc, axis=-1, keepdims=True)
            p = jnp.exp(sc)
            p = p * pl.reciprocal(jnp.sum(p, axis=-1, keepdims=True), approx=True)
            ctx.append(jnp.einsum("bqk,bkd->bqd", p.astype(cdt), v3,
                                  preferred_element_type=jnp.float32).reshape(N, HD))

        # head merge = lane concat, then ONE (N, D) @ (D, D) out_proj matmul
        attn = jnp.concatenate(ctx, axis=-1)                              # (N, D) f32
        sa = jnp.dot(attn.astype(cdt), wo_ref[l],
                     preferred_element_type=jnp.float32) + bo_ref[l]
        hf = _layernorm(hf + sa, n1w_ref[l], n1b_ref[l])                  # f32
        h = hf.astype(cdt)

        # ---- feed-forward: linear2(relu(linear1(h))) ----
        ff = jnp.dot(h, w1_ref[l], preferred_element_type=jnp.float32) + b1_ref[l]
        ff = jnp.maximum(ff, 0.0).astype(cdt)
        ff = jnp.dot(ff, w2_ref[l], preferred_element_type=jnp.float32) + b2_ref[l]
        hf = _layernorm(hf + ff, n2w_ref[l], n2b_ref[l])                  # f32
        h = hf.astype(cdt)

    # lane-dense last-token hidden states (2-D block); linear_out finishes in plain JAX
    o_ref[...] = hf.reshape(Bt, S, D)[:, S - 1, :]


# ----------------------------------------------------------------------------
# One-time parameter preparation (weight re-layout hoisted out of the forward).
# ----------------------------------------------------------------------------
def prepare_params(params, *, nhead, nlayers, compute_dtype=jnp.bfloat16):
    D = params["w_in"].shape[0]
    FF = params["lin1_w"].shape[1]
    L = nlayers
    assert D % nhead == 0
    cdt = compute_dtype
    f32 = jnp.float32

    wqkv = jnp.swapaxes(params["in_proj_w"], -1, -2).astype(cdt)          # (L, D, 3D)
    bqkv = params["in_proj_b"].reshape(L, 1, 3 * D).astype(f32)
    wo = jnp.swapaxes(params["out_proj_w"], -1, -2).astype(cdt)           # (L, D, D)
    bo = params["out_proj_b"].reshape(L, 1, D).astype(f32)
    w1 = jnp.swapaxes(params["lin1_w"], -1, -2).astype(cdt)               # (L, D, FF)
    b1 = params["lin1_b"].reshape(L, 1, FF).astype(f32)
    w2 = jnp.swapaxes(params["lin2_w"], -1, -2).astype(cdt)               # (L, FF, D)
    b2 = params["lin2_b"].reshape(L, 1, D).astype(f32)
    n1w = params["norm1_w"].reshape(L, 1, D).astype(f32)
    n1b = params["norm1_b"].reshape(L, 1, D).astype(f32)
    n2w = params["norm2_w"].reshape(L, 1, D).astype(f32)
    n2b = params["norm2_b"].reshape(L, 1, D).astype(f32)

    return {
        "weights": (wqkv, bqkv, wo, bo, w1, b1, w2, b2, n1w, n1b, n2w, n2b),
        "w_in_t": params["w_in"].T.astype(f32),          # (1, D)
        "b_in": params["b_in"].astype(f32),
        "pos": params["pos"].astype(f32),
        "w_out_t": params["w_out"].T.astype(f32),        # (D, OUT)
        "b_out": params["b_out"].astype(f32),
        "compute_dtype": cdt,
        "d_model": D, "dff": FF, "nhead": nhead, "nlayers": nlayers,
    }


# ----------------------------------------------------------------------------
# Forward wrapper: embed -> pallas_call(encoder stack) -> linear_out.
# ----------------------------------------------------------------------------
def transformer_forward(x, prep, *, block_b=None):
    B, S, _ = x.shape
    D, FF = prep["d_model"], prep["dff"]
    L, H = prep["nlayers"], prep["nhead"]
    cdt = prep["compute_dtype"]
    weights = prep["weights"]

    # On v7x (2 TCs) pass block_b = B // 2 for >=2 "parallel" grid steps; keep steps=1 on v5e/v6e.
    Bt = B if block_b is None else block_b
    assert B % Bt == 0
    steps = B // Bt
    N = Bt * S

    # linear_in (in_features == 1 -> scalar*row) + positional embedding; lane-dense kernel input
    h0 = (x @ prep["w_in_t"] + prep["b_in"] + prep["pos"]).astype(cdt)    # (B, S, D)

    # constant-index weights: single-buffered (they never change block across the grid)
    def weight_spec(a):
        return pl.BlockSpec(a.shape, lambda b, _n=a.ndim: (0,) * _n,
                            pipeline_mode=pl.Buffered(1))

    itemsize = jnp.dtype(cdt).itemsize
    weight_bytes = sum(int(a.size) * a.dtype.itemsize for a in weights)
    io_bytes = 2 * N * D * itemsize + 2 * Bt * D * 4                      # double-buffered in/out
    act_bytes = 4 * N * (3 * D + FF) * 4                                  # workspace headroom
    vmem_limit = int(min(128 * 1024 * 1024,
                         max(32 * 1024 * 1024,
                             weight_bytes + io_bytes + act_bytes + (4 << 20))))

    cost = pl.CostEstimate(
        flops=int(steps * L * N * (8 * D * D + 4 * S * D + 4 * D * FF)),
        transcendentals=int(steps * L * N * H * (S + 1)),
        bytes_accessed=int(h0.size * itemsize + weight_bytes + B * D * 4),
    )

    kernel = functools.partial(encoder_kernel, nlayers=L, nhead=H)

    h_last = pl.pallas_call(
        kernel,
        out_shape=jax.ShapeDtypeStruct((B, D), jnp.float32),
        grid=(steps,),
        in_specs=[pl.BlockSpec((Bt, S, D), lambda b: (b, 0, 0))]
                 + [weight_spec(a) for a in weights],
        out_specs=pl.BlockSpec((Bt, D), lambda b: (b, 0)),
        compiler_params=pltpu.CompilerParams(
            dimension_semantics=("parallel",),
            vmem_limit_bytes=vmem_limit),
        cost_estimate=cost,
    )(h0, *weights)

    # linear_out on the lane-dense last-token slab, then match `x.unsqueeze(-1)`
    out = h_last @ prep["w_out_t"] + prep["b_out"]                        # (B, OUT)
    return out[:, :, None]


# ----------------------------------------------------------------------------
# Deterministic synthetic parameters (PyTorch-convention shapes).
# ----------------------------------------------------------------------------
def init_params(key, in_len, out_len, d_model, nhead, nlayers, dff):
    keys = jax.random.split(key, 16)

    def w(k, shape, scale=0.05):
        return (scale * jax.random.normal(k, shape)).astype(jnp.float32)

    return {
        "w_in": w(keys[0], (d_model, 1)),                          # nn.Linear(1, d_model).weight
        "b_in": w(keys[1], (d_model,)),
        "pos": w(keys[2], (1, in_len, d_model), scale=1.0),        # nn.Parameter randn
        "in_proj_w": w(keys[3], (nlayers, 3 * d_model, d_model)),  # MHA in_proj_weight
        "in_proj_b": w(keys[4], (nlayers, 3 * d_model)),
        "out_proj_w": w(keys[5], (nlayers, d_model, d_model)),
        "out_proj_b": w(keys[6], (nlayers, d_model)),
        "lin1_w": w(keys[7], (nlayers, dff, d_model)),             # linear1.weight
        "lin1_b": w(keys[8], (nlayers, dff)),
        "lin2_w": w(keys[9], (nlayers, d_model, dff)),             # linear2.weight
        "lin2_b": w(keys[10], (nlayers, d_model)),
        "norm1_w": jnp.ones((nlayers, d_model), jnp.float32),
        "norm1_b": jnp.zeros((nlayers, d_model), jnp.float32),
        "norm2_w": jnp.ones((nlayers, d_model), jnp.float32),
        "norm2_b": jnp.zeros((nlayers, d_model), jnp.float32),
        "w_out": w(keys[11], (out_len, d_model)),                  # linear_out.weight
        "b_out": w(keys[12], (out_len,)),
    }


# ----------------------------------------------------------------------------
# Pure-JAX reference (mirrors the PyTorch forward, eval mode) for verification.
# ----------------------------------------------------------------------------
def reference_forward(x, params, *, nhead, nlayers, eps=1e-5):
    B, S, _ = x.shape
    D = params["w_in"].shape[0]
    HD = D // nhead

    def ln(y, wt, bt):
        mu = y.mean(-1, keepdims=True)
        var = ((y - mu) ** 2).mean(-1, keepdims=True)
        return (y - mu) / jnp.sqrt(var + eps) * wt + bt

    h = x @ params["w_in"].T + params["b_in"] + params["pos"]
    for l in range(nlayers):
        qkv = h @ params["in_proj_w"][l].T + params["in_proj_b"][l]
        q, k, v = qkv[..., :D], qkv[..., D:2 * D], qkv[..., 2 * D:]
        qh = q.reshape(B, S, nhead, HD).transpose(0, 2, 1, 3)
        kh = k.reshape(B, S, nhead, HD).transpose(0, 2, 1, 3)
        vh = v.reshape(B, S, nhead, HD).transpose(0, 2, 1, 3)
        sc = jnp.einsum("bhqd,bhkd->bhqk", qh, kh) / math.sqrt(HD)
        p = jax.nn.softmax(sc, axis=-1)
        attn = jnp.einsum("bhqk,bhkd->bhqd", p, vh).transpose(0, 2, 1, 3).reshape(B, S, D)
        sa = attn @ params["out_proj_w"][l].T + params["out_proj_b"][l]
        h = ln(h + sa, params["norm1_w"][l], params["norm1_b"][l])
        ff = jax.nn.relu(h @ params["lin1_w"][l].T + params["lin1_b"][l])
        ff = ff @ params["lin2_w"][l].T + params["lin2_b"][l]
        h = ln(h + ff, params["norm2_w"][l], params["norm2_b"][l])
    out = h[:, -1, :] @ params["w_out"].T + params["b_out"]
    return out[..., None]


if __name__ == "__main__":
    B, IN_LEN, OUT_LEN = 2, 8, 4
    D_MODEL, NHEAD, NLAYERS = 64, 4, 2      # module defaults: d_model=64, nhead=4, nlayers=2
    DFF = 128  # scaled-down dim_feedforward (PyTorch default is 2048); same math

    key = jax.random.PRNGKey(0)
    k_x, k_p = jax.random.split(key)
    x = jax.random.normal(k_x, (B, IN_LEN, 1), dtype=jnp.float32)
    params = init_params(k_p, IN_LEN, OUT_LEN, D_MODEL, NHEAD, NLAYERS, DFF)

    y_ref = reference_forward(x, params, nhead=NHEAD, nlayers=NLAYERS)

    # 1) f32 weights: tight numerical check of the kernel math (only approx-reciprocal softmax).
    prep_f32 = prepare_params(params, nhead=NHEAD, nlayers=NLAYERS, compute_dtype=jnp.float32)
    y32 = jax.block_until_ready(transformer_forward(x, prep_f32))
    np.testing.assert_allclose(np.asarray(y32), np.asarray(y_ref), rtol=2e-3, atol=2e-3)
    assert y32.shape == (B, OUT_LEN, 1)

    # 2) bf16 matmul operands (the perf configuration): f32 accumulation, looser tolerance.
    prep_bf16 = prepare_params(params, nhead=NHEAD, nlayers=NLAYERS, compute_dtype=jnp.bfloat16)
    y16 = jax.block_until_ready(transformer_forward(x, prep_bf16))
    np.testing.assert_allclose(np.asarray(y16), np.asarray(y_ref), rtol=5e-2, atol=5e-2)
    assert y16.shape == (B, OUT_LEN, 1)

    print("KERNEL_OK")
</pallas_src>

<mosaic_0001>
module attributes {stable_mosaic.version = 11 : i64} {
  func.func @encoder_kernel(%arg0: i32, %arg1: memref<2x8x64xf32, #tpu.memory_space<vmem>>, %arg2: memref<2x64x192xf32, #tpu.memory_space<vmem>>, %arg3: memref<2x1x192xf32, #tpu.memory_space<vmem>>, %arg4: memref<2x64x64xf32, #tpu.memory_space<vmem>>, %arg5: memref<2x1x64xf32, #tpu.memory_space<vmem>>, %arg6: memref<2x64x128xf32, #tpu.memory_space<vmem>>, %arg7: memref<2x1x128xf32, #tpu.memory_space<vmem>>, %arg8: memref<2x128x64xf32, #tpu.memory_space<vmem>>, %arg9: memref<2x1x64xf32, #tpu.memory_space<vmem>>, %arg10: memref<2x1x64xf32, #tpu.memory_space<vmem>>, %arg11: memref<2x1x64xf32, #tpu.memory_space<vmem>>, %arg12: memref<2x1x64xf32, #tpu.memory_space<vmem>>, %arg13: memref<2x1x64xf32, #tpu.memory_space<vmem>>, %arg14: memref<2x64xf32, #tpu.memory_space<vmem>>) attributes {dimension_semantics = [#tpu.dimension_semantics<parallel>], iteration_bounds = array<i64: 1>, scalar_prefetch = 0 : i64, scratch_operands = 0 : i64, tpu.core_type = #tpu.core_type<tc>, window_params = [{transform_indices = @transform_0, window_bounds = array<i64: 2, 8, 64>}, {pipeline_mode = #tpu.pipeline_mode<synchronous>, transform_indices = @transform_1, window_bounds = array<i64: 2, 64, 192>}, {pipeline_mode = #tpu.pipeline_mode<synchronous>, transform_indices = @transform_2, window_bounds = array<i64: 2, 1, 192>}, {pipeline_mode = #tpu.pipeline_mode<synchronous>, transform_indices = @transform_3, window_bounds = array<i64: 2, 64, 64>}, {pipeline_mode = #tpu.pipeline_mode<synchronous>, transform_indices = @transform_4, window_bounds = array<i64: 2, 1, 64>}, {pipeline_mode = #tpu.pipeline_mode<synchronous>, transform_indices = @transform_5, window_bounds = array<i64: 2, 64, 128>}, {pipeline_mode = #tpu.pipeline_mode<synchronous>, transform_indices = @transform_6, window_bounds = array<i64: 2, 1, 128>}, {pipeline_mode = #tpu.pipeline_mode<synchronous>, transform_indices = @transform_7, window_bounds = array<i64: 2, 128, 64>}, {pipeline_mode = #tpu.pipeline_mode<synchronous>, transform_indices = @transform_8, window_bounds = array<i64: 2, 1, 64>}, {pipeline_mode = #tpu.pipeline_mode<synchronous>, transform_indices = @transform_9, window_bounds = array<i64: 2, 1, 64>}, {pipeline_mode = #tpu.pipeline_mode<synchronous>, transform_indices = @transform_10, window_bounds = array<i64: 2, 1, 64>}, {pipeline_mode = #tpu.pipeline_mode<synchronous>, transform_indices = @transform_11, window_bounds = array<i64: 2, 1, 64>}, {pipeline_mode = #tpu.pipeline_mode<synchronous>, transform_indices = @transform_12, window_bounds = array<i64: 2, 1, 64>}, {transform_indices = @transform_13, window_bounds = array<i64: 2, 64>}]} {
    %c0 = arith.constant 0 : index
    %c0_0 = arith.constant 0 : index
    %c0_1 = arith.constant 0 : index
    %0 = vector.load %arg1[%c0, %c0_0, %c0_1] : memref<2x8x64xf32, #tpu.memory_space<vmem>>, vector<2x8x64xf32>
    %1 = vector.shape_cast %0 : vector<2x8x64xf32> to vector<16x64xf32>
    %c0_2 = arith.constant 0 : index
    %c0_3 = arith.constant 0 : index
    %c0_4 = arith.constant 0 : index
    %2 = vector.load %arg2[%c0_2, %c0_3, %c0_4] : memref<2x64x192xf32, #tpu.memory_space<vmem>>, vector<1x64x192xf32>
    %3 = vector.shape_cast %2 : vector<1x64x192xf32> to vector<64x192xf32>
    %cst = arith.constant dense<0.000000e+00> : vector<16x192xf32>
    %4 = tpu.matmul %1, %3, %cst {dimension_numbers = #tpu.dot_dimension_numbers<[1], [0], [0], [1], [0, 0, 1, 1], [], []>} : vector<16x64xf32>, vector<64x192xf32>, vector<16x192xf32> -> vector<16x192xf32>
    %c0_5 = arith.constant 0 : index
    %c0_6 = arith.constant 0 : index
    %c0_7 = arith.constant 0 : index
    %5 = vector.load %arg3[%c0_5, %c0_6, %c0_7] : memref<2x1x192xf32, #tpu.memory_space<vmem>>, vector<1x1x192xf32>
    %6 = vector.shape_cast %5 : vector<1x1x192xf32> to vector<1x192xf32>
    %7 = vector.broadcast %6 : vector<1x192xf32> to vector<16x192xf32>
    %8 = arith.addf %4, %7 : vector<16x192xf32>
    %9 = vector.extract_strided_slice %8 {offsets = [0, 0], sizes = [16, 16], strides = [1, 1]} : vector<16x192xf32> to vector<16x16xf32>
    %10 = vector.shape_cast %9 : vector<16x16xf32> to vector<2x8x16xf32>
    %11 = vector.extract_strided_slice %8 {offsets = [0, 64], sizes = [16, 16], strides = [1, 1]} : vector<16x192xf32> to vector<16x16xf32>
    %12 = vector.shape_cast %11 : vector<16x16xf32> to vector<2x8x16xf32>
    %13 = vector.extract_strided_slice %8 {offsets = [0, 128], sizes = [16, 16], strides = [1, 1]} : vector<16x192xf32> to vector<16x16xf32>
    %14 = vector.shape_cast %13 : vector<16x16xf32> to vector<2x8x16xf32>
    "tpu.trace_start"() <{level = 10 : i32, message = "bqd,bkd->bqk"}> : () -> ()
    %cst_8 = arith.constant dense<0.000000e+00> : vector<2x8x8xf32>
    %15 = tpu.matmul %10, %12, %cst_8 {dimension_numbers = #tpu.dot_dimension_numbers<[2], [2], [1], [1], [0, 0, 0, 1, 1, 1], [0], [0]>} : vector<2x8x16xf32>, vector<2x8x16xf32>, vector<2x8x8xf32> -> vector<2x8x8xf32>
    "tpu.trace_stop"() : () -> ()
    %cst_9 = arith.constant 2.500000e-01 : f32
    %16 = vector.broadcast %cst_9 : f32 to vector<2x8x8xf32>
    %17 = arith.mulf %15, %16 : vector<2x8x8xf32>
    %cst_10 = arith.constant dense<0xFF800000> : vector<2x8xf32>
    %18 = vector.multi_reduction <maximumf>, %17, %cst_10 [2] : vector<2x8x8xf32> to vector<2x8xf32>
    %19 = vector.shape_cast %18 : vector<2x8xf32> to vector<2x8x1xf32>
    %20 = vector.broadcast %19 : vector<2x8x1xf32> to vector<2x8x8xf32>
    %21 = arith.subf %17, %20 : vector<2x8x8xf32>
    %22 = math.exp %21 : vector<2x8x8xf32>
    %cst_11 = arith.constant dense<0.000000e+00> : vector<2x8xf32>
    %23 = vector.multi_reduction <add>, %22, %cst_11 [2] : vector<2x8x8xf32> to vector<2x8xf32>
    %24 = vector.shape_cast %23 : vector<2x8xf32> to vector<2x8x1xf32>
    %25 = tpu.reciprocal %24 {approx = true} : vector<2x8x1xf32> -> vector<2x8x1xf32>
    %26 = vector.broadcast %25 : vector<2x8x1xf32> to vector<2x8x8xf32>
    %27 = arith.mulf %22, %26 : vector<2x8x8xf32>
    "tpu.trace_start"() <{level = 10 : i32, message = "bqk,bkd->bqd"}> : () -> ()
    %cst_12 = arith.constant dense<0.000000e+00> : vector<2x8x16xf32>
    %28 = tpu.matmul %27, %14, %cst_12 {dimension_numbers = #tpu.dot_dimension_numbers<[2], [1], [1], [2], [0, 0, 0, 1, 1, 2], [0], [0]>} : vector<2x8x8xf32>, vector<2x8x16xf32>, vector<2x8x16xf32> -> vector<2x8x16xf32>
    "tpu.trace_stop"() : () -> ()
    %29 = vector.shape_cast %28 : vector<2x8x16xf32> to vector<16x16xf32>
    %30 = vector.extract_strided_slice %8 {offsets = [0, 16], sizes = [16, 16], strides = [1, 1]} : vector<16x192xf32> to vector<16x16xf32>
    %31 = vector.shape_cast %30 : vector<16x16xf32> to vector<2x8x16xf32>
    %32 = vector.extract_strided_slice %8 {offsets = [0, 80], sizes = [16, 16], strides = [1, 1]} : vector<16x192xf32> to vector<16x16xf32>
    %33 = vector.shape_cast %32 : vector<16x16xf32> to vector<2x8x16xf32>
    %34 = vector.extract_strided_slice %8 {offsets = [0, 144], sizes = [16, 16], strides = [1, 1]} : vector<16x192xf32> to vector<16x16xf32>
    %35 = vector.shape_cast %34 : vector<16x16xf32> to vector<2x8x16xf32>
    "tpu.trace_start"() <{level = 10 : i32, message = "bqd,bkd->bqk"}> : () -> ()
    %cst_13 = arith.constant dense<0.000000e+00> : vector<2x8x8xf32>
    %36 = tpu.matmul %31, %33, %cst_13 {dimension_numbers = #tpu.dot_dimension_numbers<[2], [2], [1], [1], [0, 0, 0, 1, 1, 1], [0], [0]>} : vector<2x8x16xf32>, vector<2x8x16xf32>, vector<2x8x8xf32> -> vector<2x8x8xf32>
    "tpu.trace_stop"() : () -> ()
    %cst_14 = arith.constant 2.500000e-01 : f32
    %37 = vector.broadcast %cst_14 : f32 to vector<2x8x8xf32>
    %38 = arith.mulf %36, %37 : vector<2x8x8xf32>
    %cst_15 = arith.constant dense<0xFF800000> : vector<2x8xf32>
    %39 = vector.multi_reduction <maximumf>, %38, %cst_15 [2] : vector<2x8x8xf32> to vector<2x8xf32>
    %40 = vector.shape_cast %39 : vector<2x8xf32> to vector<2x8x1xf32>
    %41 = vector.broadcast %40 : vector<2x8x1xf32> to vector<2x8x8xf32>
    %42 = arith.subf %38, %41 : vector<2x8x8xf32>
    %43 = math.exp %42 : vector<2x8x8xf32>
    %cst_16 = arith.constant dense<0.000000e+00> : vector<2x8xf32>
    %44 = vector.multi_reduction <add>, %43, %cst_16 [2] : vector<2x8x8xf32> to vector<2x8xf32>
    %45 = vector.shape_cast %44 : vector<2x8xf32> to vector<2x8x1xf32>
    %46 = tpu.reciprocal %45 {approx = true} : vector<2x8x1xf32> -> vector<2x8x1xf32>
    %47 = vector.broadcast %46 : vector<2x8x1xf32> to vector<2x8x8xf32>
    %48 = arith.mulf %43, %47 : vector<2x8x8xf32>
    "tpu.trace_start"() <{level = 10 : i32, message = "bqk,bkd->bqd"}> : () -> ()
    %cst_17 = arith.constant dense<0.000000e+00> : vector<2x8x16xf32>
    %49 = tpu.matmul %48, %35, %cst_17 {dimension_numbers = #tpu.dot_dimension_numbers<[2], [1], [1], [2], [0, 0, 0, 1, 1, 2], [0], [0]>} : vector<2x8x8xf32>, vector<2x8x16xf32>, vector<2x8x16xf32> -> vector<2x8x16xf32>
    "tpu.trace_stop"() : () -> ()
    %50 = vector.shape_cast %49 : vector<2x8x16xf32> to vector<16x16xf32>
    %51 = vector.extract_strided_slice %8 {offsets = [0, 32], sizes = [16, 16], strides = [1, 1]} : vector<16x192xf32> to vector<16x16xf32>
    %52 = vector.shape_cast %51 : vector<16x16xf32> to vector<2x8x16xf32>
    %53 = vector.extract_strided_slice %8 {offsets = [0, 96], sizes = [16, 16], strides = [1, 1]} : vector<16x192xf32> to vector<16x16xf32>
    %54 = vector.shape_cast %53 : vector<16x16xf32> to vector<2x8x16xf32>
    %55 = vector.extract_strided_slice %8 {offsets = [0, 160], sizes = [16, 16], strides = [1, 1]} : vector<16x192xf32> to vector<16x16xf32>
    %56 = vector.shape_cast %55 : vector<16x16xf32> to vector<2x8x16xf32>
    "tpu.trace_start"() <{level = 10 : i32, message = "bqd,bkd->bqk"}> : () -> ()
    %cst_18 = arith.constant dense<0.000000e+00> : vector<2x8x8xf32>
    %57 = tpu.matmul %52, %54, %cst_18 {dimension_numbers = #tpu.dot_dimension_numbers<[2], [2], [1], [1], [0, 0, 0, 1, 1, 1], [0], [0]>} : vector<2x8x16xf32>, vector<2x8x16xf32>, vector<2x8x8xf32> -> vector<2x8x8xf32>
    "tpu.trace_stop"() : () -> ()
    %cst_19 = arith.constant 2.500000e-01 : f32
    %58 = vector.broadcast %cst_19 : f32 to vector<2x8x8xf32>
    %59 = arith.mulf %57, %58 : vector<2x8x8xf32>
    %cst_20 = arith.constant dense<0xFF800000> : vector<2x8xf32>
    %60 = vector.multi_reduction <maximumf>, %59, %cst_20 [2] : vector<2x8x8xf32> to vector<2x8xf32>
    %61 = vector.shape_cast %60 : vector<2x8xf32> to vector<2x8x1xf32>
    %62 = vector.broadcast %61 : vector<2x8x1xf32> to vector<2x8x8xf32>
    %63 = arith.subf %59, %62 : vector<2x8x8xf32>
    %64 = math.exp %63 : vector<2x8x8xf32>
    %cst_21 = arith.constant dense<0.000000e+00> : vector<2x8xf32>
    %65 = vector.multi_reduction <add>, %64, %cst_21 [2] : vector<2x8x8xf32> to vector<2x8xf32>
    %66 = vector.shape_cast %65 : vector<2x8xf32> to vector<2x8x1xf32>
    %67 = tpu.reciprocal %66 {approx = true} : vector<2x8x1xf32> -> vector<2x8x1xf32>
    %68 = vector.broadcast %67 : vector<2x8x1xf32> to vector<2x8x8xf32>
    %69 = arith.mulf %64, %68 : vector<2x8x8xf32>
    "tpu.trace_start"() <{level = 10 : i32, message = "bqk,bkd->bqd"}> : () -> ()
    %cst_22 = arith.constant dense<0.000000e+00> : vector<2x8x16xf32>
    %70 = tpu.matmul %69, %56, %cst_22 {dimension_numbers = #tpu.dot_dimension_numbers<[2], [1], [1], [2], [0, 0, 0, 1, 1, 2], [0], [0]>} : vector<2x8x8xf32>, vector<2x8x16xf32>, vector<2x8x16xf32> -> vector<2x8x16xf32>
    "tpu.trace_stop"() : () -> ()
    %71 = vector.shape_cast %70 : vector<2x8x16xf32> to vector<16x16xf32>
    %72 = vector.extract_strided_slice %8 {offsets = [0, 48], sizes = [16, 16], strides = [1, 1]} : vector<16x192xf32> to vector<16x16xf32>
    %73 = vector.shape_cast %72 : vector<16x16xf32> to vector<2x8x16xf32>
    %74 = vector.extract_strided_slice %8 {offsets = [0, 112], sizes = [16, 16], strides = [1, 1]} : vector<16x192xf32> to vector<16x16xf32>
    %75 = vector.shape_cast %74 : vector<16x16xf32> to vector<2x8x16xf32>
    %76 = vector.extract_strided_slice %8 {offsets = [0, 176], sizes = [16, 16], strides = [1, 1]} : vector<16x192xf32> to vector<16x16xf32>
    %77 = vector.shape_cast %76 : vector<16x16xf32> to vector<2x8x16xf32>
    "tpu.trace_start"() <{level = 10 : i32, message = "bqd,bkd->bqk"}> : () -> ()
    %cst_23 = arith.constant dense<0.000000e+00> : vector<2x8x8xf32>
    %78 = tpu.matmul %73, %75, %cst_23 {dimension_numbers = #tpu.dot_dimension_numbers<[2], [2], [1], [1], [0, 0, 0, 1, 1, 1], [0], [0]>} : vector<2x8x16xf32>, vector<2x8x16xf32>, vector<2x8x8xf32> -> vector<2x8x8xf32>
    "tpu.trace_stop"() : () -> ()
    %cst_24 = arith.constant 2.500000e-01 : f32
    %79 = vector.broadcast %cst_24 : f32 to vector<2x8x8xf32>
    %80 = arith.mulf %78, %79 : vector<2x8x8xf32>
    %cst_25 = arith.constant dense<0xFF800000> : vector<2x8xf32>
    %81 = vector.multi_reduction <maximumf>, %80, %cst_25 [2] : vector<2x8x8xf32> to vector<2x8xf32>
    %82 = vector.shape_cast %81 : vector<2x8xf32> to vector<2x8x1xf32>
    %83 = vector.broadcast %82 : vector<2x8x1xf32> to vector<2x8x8xf32>
    %84 = arith.subf %80, %83 : vector<2x8x8xf32>
    %85 = math.exp %84 : vector<2x8x8xf32>
    %cst_26 = arith.constant dense<0.000000e+00> : vector<2x8xf32>
    %86 = vector.multi_reduction <add>, %85, %cst_26 [2] : vector<2x8x8xf32> to vector<2x8xf32>
    %87 = vector.shape_cast %86 : vector<2x8xf32> to vector<2x8x1xf32>
    %88 = tpu.reciprocal %87 {approx = true} : vector<2x8x1xf32> -> vector<2x8x1xf32>
    %89 = vector.broadcast %88 : vector<2x8x1xf32> to vector<2x8x8xf32>
    %90 = arith.mulf %85, %89 : vector<2x8x8xf32>
    "tpu.trace_start"() <{level = 10 : i32, message = "bqk,bkd->bqd"}> : () -> ()
    %cst_27 = arith.constant dense<0.000000e+00> : vector<2x8x16xf32>
    %91 = tpu.matmul %90, %77, %cst_27 {dimension_numbers = #tpu.dot_dimension_numbers<[2], [1], [1], [2], [0, 0, 0, 1, 1, 2], [0], [0]>} : vector<2x8x8xf32>, vector<2x8x16xf32>, vector<2x8x16xf32> -> vector<2x8x16xf32>
    "tpu.trace_stop"() : () -> ()
    %92 = vector.shape_cast %91 : vector<2x8x16xf32> to vector<16x16xf32>
    %93 = tpu.concatenate %29, %50, %71, %92 in 1 : vector<16x16xf32>, vector<16x16xf32>, vector<16x16xf32>, vector<16x16xf32> -> vector<16x64xf32>
    %c0_28 = arith.constant 0 : index
    %c0_29 = arith.constant 0 : index
    %c0_30 = arith.constant 0 : index
    %94 = vector.load %arg4[%c0_28, %c0_29, %c0_30] : memref<2x64x64xf32, #tpu.memory_space<vmem>>, vector<1x64x64xf32>
    %95 = vector.shape_cast %94 : vector<1x64x64xf32> to vector<64x64xf32>
    %cst_31 = arith.constant dense<0.000000e+00> : vector<16x64xf32>
    %96 = tpu.matmul %93, %95, %cst_31 {dimension_numbers = #tpu.dot_dimension_numbers<[1], [0], [0], [1], [0, 0, 1, 1], [], []>} : vector<16x64xf32>, vector<64x64xf32>, vector<16x64xf32> -> vector<16x64xf32>
    %c0_32 = arith.constant 0 : index
    %c0_33 = arith.constant 0 : index
    %c0_34 = arith.constant 0 : index
    %97 = vector.load %arg5[%c0_32, %c0_33, %c0_34] : memref<2x1x64xf32, #tpu.memory_space<vmem>>, vector<1x1x64xf32>
    %98 = vector.shape_cast %97 : vector<1x1x64xf32> to vector<1x64xf32>
    %99 = vector.broadcast %98 : vector<1x64xf32> to vector<16x64xf32>
    %100 = arith.addf %96, %99 : vector<16x64xf32>
    %101 = arith.addf %1, %100 : vector<16x64xf32>
    %c0_35 = arith.constant 0 : index
    %c0_36 = arith.constant 0 : index
    %c0_37 = arith.constant 0 : index
    %102 = vector.load %arg10[%c0_35, %c0_36, %c0_37] : memref<2x1x64xf32, #tpu.memory_space<vmem>>, vector<1x1x64xf32>
    %103 = vector.shape_cast %102 : vector<1x1x64xf32> to vector<1x64xf32>
    %c0_38 = arith.constant 0 : index
    %c0_39 = arith.constant 0 : index
    %c0_40 = arith.constant 0 : index
    %104 = vector.load %arg11[%c0_38, %c0_39, %c0_40] : memref<2x1x64xf32, #tpu.memory_space<vmem>>, vector<1x1x64xf32>
    %105 = vector.shape_cast %104 : vector<1x1x64xf32> to vector<1x64xf32>
    %cst_41 = arith.constant dense<0.000000e+00> : vector<16xf32>
    %106 = vector.multi_reduction <add>, %101, %cst_41 [1] : vector<16x64xf32> to vector<16xf32>
    %107 = vector.shape_cast %106 : vector<16xf32> to vector<16x1xf32>
    %cst_42 = arith.constant 6.400000e+01 : f32
    %108 = vector.broadcast %cst_42 : f32 to vector<16x1xf32>
    %109 = arith.divf %107, %108 : vector<16x1xf32>
    %110 = vector.broadcast %109 : vector<16x1xf32> to vector<16x64xf32>
    %111 = arith.subf %101, %110 : vector<16x64xf32>
    %112 = arith.mulf %111, %111 : vector<16x64xf32>
    %cst_43 = arith.constant dense<0.000000e+00> : vector<16xf32>
    %113 = vector.multi_reduction <add>, %112, %cst_43 [1] : vector<16x64xf32> to vector<16xf32>
    %114 = vector.shape_cast %113 : vector<16xf32> to vector<16x1xf32>
    %cst_44 = arith.constant 6.400000e+01 : f32
    %115 = vector.broadcast %cst_44 : f32 to vector<16x1xf32>
    %116 = arith.divf %114, %115 : vector<16x1xf32>
    %117 = vector.broadcast %109 : vector<16x1xf32> to vector<16x64xf32>
    %118 = arith.subf %101, %117 : vector<16x64xf32>
    %cst_45 = arith.constant 9.99999974E-6 : f32
    %119 = vector.broadcast %cst_45 : f32 to vector<16x1xf32>
    %120 = arith.addf %116, %119 : vector<16x1xf32>
    %121 = math.rsqrt %120 : vector<16x1xf32>
    %122 = vector.broadcast %121 : vector<16x1xf32> to vector<16x64xf32>
    %123 = arith.mulf %118, %122 : vector<16x64xf32>
    %124 = vector.broadcast %103 : vector<1x64xf32> to vector<16x64xf32>
    %125 = arith.mulf %123, %124 : vector<16x64xf32>
    %126 = vector.broadcast %105 : vector<1x64xf32> to vector<16x64xf32>
    %127 = arith.addf %125, %126 : vector<16x64xf32>
    %c0_46 = arith.constant 0 : index
    %c0_47 = arith.constant 0 : index
    %c0_48 = arith.constant 0 : index
    %128 = vector.load %arg6[%c0_46, %c0_47, %c0_48] : memref<2x64x128xf32, #tpu.memory_space<vmem>>, vector<1x64x128xf32>
    %129 = vector.shape_cast %128 : vector<1x64x128xf32> to vector<64x128xf32>
    %cst_49 = arith.constant dense<0.000000e+00> : vector<16x128xf32>
    %130 = tpu.matmul %127, %129, %cst_49 {dimension_numbers = #tpu.dot_dimension_numbers<[1], [0], [0], [1], [0, 0, 1, 1], [], []>} : vector<16x64xf32>, vector<64x128xf32>, vector<16x128xf32> -> vector<16x128xf32>
    %c0_50 = arith.constant 0 : index
    %c0_51 = arith.constant 0 : index
    %c0_52 = arith.constant 0 : index
    %131 = vector.load %arg7[%c0_50, %c0_51, %c0_52] : memref<2x1x128xf32, #tpu.memory_space<vmem>>, vector<1x1x128xf32>
    %132 = vector.shape_cast %131 : vector<1x1x128xf32> to vector<1x128xf32>
    %133 = vector.broadcast %132 : vector<1x128xf32> to vector<16x128xf32>
    %134 = arith.addf %130, %133 : vector<16x128xf32>
    %cst_53 = arith.constant 0.000000e+00 : f32
    %135 = vector.broadcast %cst_53 : f32 to vector<16x128xf32>
    %136 = arith.maximumf %134, %135 : vector<16x128xf32>
    %c0_54 = arith.constant 0 : index
    %c0_55 = arith.constant 0 : index
    %c0_56 = arith.constant 0 : index
    %137 = vector.load %arg8[%c0_54, %c0_55, %c0_56] : memref<2x128x64xf32, #tpu.memory_space<vmem>>, vector<1x128x64xf32>
    %138 = vector.shape_cast %137 : vector<1x128x64xf32> to vector<128x64xf32>
    %cst_57 = arith.constant dense<0.000000e+00> : vector<16x64xf32>
    %139 = tpu.matmul %136, %138, %cst_57 {dimension_numbers = #tpu.dot_dimension_numbers<[1], [0], [0], [1], [0, 0, 1, 1], [], []>} : vector<16x128xf32>, vector<128x64xf32>, vector<16x64xf32> -> vector<16x64xf32>
    %c0_58 = arith.constant 0 : index
    %c0_59 = arith.constant 0 : index
    %c0_60 = arith.constant 0 : index
    %140 = vector.load %arg9[%c0_58, %c0_59, %c0_60] : memref<2x1x64xf32, #tpu.memory_space<vmem>>, vector<1x1x64xf32>
    %141 = vector.shape_cast %140 : vector<1x1x64xf32> to vector<1x64xf32>
    %142 = vector.broadcast %141 : vector<1x64xf32> to vector<16x64xf32>
    %143 = arith.addf %139, %142 : vector<16x64xf32>
    %144 = arith.addf %127, %143 : vector<16x64xf32>
    %c0_61 = arith.constant 0 : index
    %c0_62 = arith.constant 0 : index
    %c0_63 = arith.constant 0 : index
    %145 = vector.load %arg12[%c0_61, %c0_62, %c0_63] : memref<2x1x64xf32, #tpu.memory_space<vmem>>, vector<1x1x64xf32>
    %146 = vector.shape_cast %145 : vector<1x1x64xf32> to vector<1x64xf32>
    %c0_64 = arith.constant 0 : index
    %c0_65 = arith.constant 0 : index
    %c0_66 = arith.constant 0 : index
    %147 = vector.load %arg13[%c0_64, %c0_65, %c0_66] : memref<2x1x64xf32, #tpu.memory_space<vmem>>, vector<1x1x64xf32>
    %148 = vector.shape_cast %147 : vector<1x1x64xf32> to vector<1x64xf32>
    %cst_67 = arith.constant dense<0.000000e+00> : vector<16xf32>
    %149 = vector.multi_reduction <add>, %144, %cst_67 [1] : vector<16x64xf32> to vector<16xf32>
    %150 = vector.shape_cast %149 : vector<16xf32> to vector<16x1xf32>
    %cst_68 = arith.constant 6.400000e+01 : f32
    %151 = vector.broadcast %cst_68 : f32 to vector<16x1xf32>
    %152 = arith.divf %150, %151 : vector<16x1xf32>
    %153 = vector.broadcast %152 : vector<16x1xf32> to vector<16x64xf32>
    %154 = arith.subf %144, %153 : vector<16x64xf32>
    %155 = arith.mulf %154, %154 : vector<16x64xf32>
    %cst_69 = arith.constant dense<0.000000e+00> : vector<16xf32>
    %156 = vector.multi_reduction <add>, %155, %cst_69 [1] : vector<16x64xf32> to vector<16xf32>
    %157 = vector.shape_cast %156 : vector<16xf32> to vector<16x1xf32>
    %cst_70 = arith.constant 6.400000e+01 : f32
    %158 = vector.broadcast %cst_70 : f32 to vector<16x1xf32>
    %159 = arith.divf %157, %158 : vector<16x1xf32>
    %160 = vector.broadcast %152 : vector<16x1xf32> to vector<16x64xf32>
    %161 = arith.subf %144, %160 : vector<16x64xf32>
    %cst_71 = arith.constant 9.99999974E-6 : f32
    %162 = vector.broadcast %cst_71 : f32 to vector<16x1xf32>
    %163 = arith.addf %159, %162 : vector<16x1xf32>
    %164 = math.rsqrt %163 : vector<16x1xf32>
    %165 = vector.broadcast %164 : vector<16x1xf32> to vector<16x64xf32>
    %166 = arith.mulf %161, %165 : vector<16x64xf32>
    %167 = vector.broadcast %146 : vector<1x64xf32> to vector<16x64xf32>
    %168 = arith.mulf %166, %167 : vector<16x64xf32>
    %169 = vector.broadcast %148 : vector<1x64xf32> to vector<16x64xf32>
    %170 = arith.addf %168, %169 : vector<16x64xf32>
    %c1 = arith.constant 1 : index
    %c0_72 = arith.constant 0 : index
    %c0_73 = arith.constant 0 : index
    %171 = vector.load %arg2[%c1, %c0_72, %c0_73] : memref<2x64x192xf32, #tpu.memory_space<vmem>>, vector<1x64x192xf32>
    %172 = vector.shape_cast %171 : vector<1x64x192xf32> to vector<64x192xf32>
    %cst_74 = arith.constant dense<0.000000e+00> : vector<16x192xf32>
    %173 = tpu.matmul %170, %172, %cst_74 {dimension_numbers = #tpu.dot_dimension_numbers<[1], [0], [0], [1], [0, 0, 1, 1], [], []>} : vector<16x64xf32>, vector<64x192xf32>, vector<16x192xf32> -> vector<16x192xf32>
    %c1_75 = arith.constant 1 : index
    %c0_76 = arith.constant 0 : index
    %c0_77 = arith.constant 0 : index
    %174 = vector.load %arg3[%c1_75, %c0_76, %c0_77] : memref<2x1x192xf32, #tpu.memory_space<vmem>>, vector<1x1x192xf32>
    %175 = vector.shape_cast %174 : vector<1x1x192xf32> to vector<1x192xf32>
    %176 = vector.broadcast %175 : vector<1x192xf32> to vector<16x192xf32>
    %177 = arith.addf %173, %176 : vector<16x192xf32>
    %178 = vector.extract_strided_slice %177 {offsets = [0, 0], sizes = [16, 16], strides = [1, 1]} : vector<16x192xf32> to vector<16x16xf32>
    %179 = vector.shape_cast %178 : vector<16x16xf32> to vector<2x8x16xf32>
    %180 = vector.extract_strided_slice %177 {offsets = [0, 64], sizes = [16, 16], strides = [1, 1]} : vector<16x192xf32> to vector<16x16xf32>
    %181 = vector.shape_cast %180 : vector<16x16xf32> to vector<2x8x16xf32>
    %182 = vector.extract_strided_slice %177 {offsets = [0, 128], sizes = [16, 16], strides = [1, 1]} : vector<16x192xf32> to vector<16x16xf32>
    %183 = vector.shape_cast %182 : vector<16x16xf32> to vector<2x8x16xf32>
    "tpu.trace_start"() <{level = 10 : i32, message = "bqd,bkd->bqk"}> : () -> ()
    %cst_78 = arith.constant dense<0.000000e+00> : vector<2x8x8xf32>
    %184 = tpu.matmul %179, %181, %cst_78 {dimension_numbers = #tpu.dot_dimension_numbers<[2], [2], [1], [1], [0, 0, 0, 1, 1, 1], [0], [0]>} : vector<2x8x16xf32>, vector<2x8x16xf32>, vector<2x8x8xf32> -> vector<2x8x8xf32>
    "tpu.trace_stop"() : () -> ()
    %cst_79 = arith.constant 2.500000e-01 : f32
    %185 = vector.broadcast %cst_79 : f32 to vector<2x8x8xf32>
    %186 = arith.mulf %184, %185 : vector<2x8x8xf32>
    %cst_80 = arith.constant dense<0xFF800000> : vector<2x8xf32>
    %187 = vector.multi_reduction <maximumf>, %186, %cst_80 [2] : vector<2x8x8xf32> to vector<2x8xf32>
    %188 = vector.shape_cast %187 : vector<2x8xf32> to vector<2x8x1xf32>
    %189 = vector.broadcast %188 : vector<2x8x1xf32> to vector<2x8x8xf32>
    %190 = arith.subf %186, %189 : vector<2x8x8xf32>
    %191 = math.exp %190 : vector<2x8x8xf32>
    %cst_81 = arith.constant dense<0.000000e+00> : vector<2x8xf32>
    %192 = vector.multi_reduction <add>, %191, %cst_81 [2] : vector<2x8x8xf32> to vector<2x8xf32>
    %193 = vector.shape_cast %192 : vector<2x8xf32> to vector<2x8x1xf32>
    %194 = tpu.reciprocal %193 {approx = true} : vector<2x8x1xf32> -> vector<2x8x1xf32>
    %195 = vector.broadcast %194 : vector<2x8x1xf32> to vector<2x8x8xf32>
    %196 = arith.mulf %191, %195 : vector<2x8x8xf32>
    "tpu.trace_start"() <{level = 10 : i32, message = "bqk,bkd->bqd"}> : () -> ()
    %cst_82 = arith.constant dense<0.000000e+00> : vector<2x8x16xf32>
    %197 = tpu.matmul %196, %183, %cst_82 {dimension_numbers = #tpu.dot_dimension_numbers<[2], [1], [1], [2], [0, 0, 0, 1, 1, 2], [0], [0]>} : vector<2x8x8xf32>, vector<2x8x16xf32>, vector<2x8x16xf32> -> vector<2x8x16xf32>
    "tpu.trace_stop"() : () -> ()
    %198 = vector.shape_cast %197 : vector<2x8x16xf32> to vector<16x16xf32>
    %199 = vector.extract_strided_slice %177 {offsets = [0, 16], sizes = [16, 16], strides = [1, 1]} : vector<16x192xf32> to vector<16x16xf32>
    %200 = vector.shape_cast %199 : vector<16x16xf32> to vector<2x8x16xf32>
    %201 = vector.extract_strided_slice %177 {offsets = [0, 80], sizes = [16, 16], strides = [1, 1]} : vector<16x192xf32> to vector<16x16xf32>
    %202 = vector.shape_cast %201 : vector<16x16xf32> to vector<2x8x16xf32>
    %203 = vector.extract_strided_slice %177 {offsets = [0, 144], sizes = [16, 16], strides = [1, 1]} : vector<16x192xf32> to vector<16x16xf32>
    %204 = vector.shape_cast %203 : vector<16x16xf32> to vector<2x8x16xf32>
    "tpu.trace_start"() <{level = 10 : i32, message = "bqd,bkd->bqk"}> : () -> ()
    %cst_83 = arith.constant dense<0.000000e+00> : vector<2x8x8xf32>
    %205 = tpu.matmul %200, %202, %cst_83 {dimension_numbers = #tpu.dot_dimension_numbers<[2], [2], [1], [1], [0, 0, 0, 1, 1, 1], [0], [0]>} : vector<2x8x16xf32>, vector<2x8x16xf32>, vector<2x8x8xf32> -> vector<2x8x8xf32>
    "tpu.trace_stop"() : () -> ()
    %cst_84 = arith.constant 2.500000e-01 : f32
    %206 = vector.broadcast %cst_84 : f32 to vector<2x8x8xf32>
    %207 = arith.mulf %205, %206 : vector<2x8x8xf32>
    %cst_85 = arith.constant dense<0xFF800000> : vector<2x8xf32>
    %208 = vector.multi_reduction <maximumf>, %207, %cst_85 [2] : vector<2x8x8xf32> to vector<2x8xf32>
    %209 = vector.shape_cast %208 : vector<2x8xf32> to vector<2x8x1xf32>
    %210 = vector.broadcast %209 : vector<2x8x1xf32> to vector<2x8x8xf32>
    %211 = arith.subf %207, %210 : vector<2x8x8xf32>
    %212 = math.exp %211 : vector<2x8x8xf32>
    %cst_86 = arith.constant dense<0.000000e+00> : vector<2x8xf32>
    %213 = vector.multi_reduction <add>, %212, %cst_86 [2] : vector<2x8x8xf32> to vector<2x8xf32>
    %214 = vector.shape_cast %213 : vector<2x8xf32> to vector<2x8x1xf32>
    %215 = tpu.reciprocal %214 {approx = true} : vector<2x8x1xf32> -> vector<2x8x1xf32>
    %216 = vector.broadcast %215 : vector<2x8x1xf32> to vector<2x8x8xf32>
    %217 = arith.mulf %212, %216 : vector<2x8x8xf32>
    "tpu.trace_start"() <{level = 10 : i32, message = "bqk,bkd->bqd"}> : () -> ()
    %cst_87 = arith.constant dense<0.000000e+00> : vector<2x8x16xf32>
    %218 = tpu.matmul %217, %204, %cst_87 {dimension_numbers = #tpu.dot_dimension_numbers<[2], [1], [1], [2], [0, 0, 0, 1, 1, 2], [0], [0]>} : vector<2x8x8xf32>, vector<2x8x16xf32>, vector<2x8x16xf32> -> vector<2x8x16xf32>
    "tpu.trace_stop"() : () -> ()
    %219 = vector.shape_cast %218 : vector<2x8x16xf32> to vector<16x16xf32>
    %220 = vector.extract_strided_slice %177 {offsets = [0, 32], sizes = [16, 16], strides = [1, 1]} : vector<16x192xf32> to vector<16x16xf32>
    %221 = vector.shape_cast %220 : vector<16x16xf32> to vector<2x8x16xf32>
    %222 = vector.extract_strided_slice %177 {offsets = [0, 96], sizes = [16, 16], strides = [1, 1]} : vector<16x192xf32> to vector<16x16xf32>
    %223 = vector.shape_cast %222 : vector<16x16xf32> to vector<2x8x16xf32>
    %224 = vector.extract_strided_slice %177 {offsets = [0, 160], sizes = [16, 16], strides = [1, 1]} : vector<16x192xf32> to vector<16x16xf32>
    %225 = vector.shape_cast %224 : vector<16x16xf32> to vector<2x8x16xf32>
    "tpu.trace_start"() <{level = 10 : i32, message = "bqd,bkd->bqk"}> : () -> ()
    %cst_88 = arith.constant dense<0.000000e+00> : vector<2x8x8xf32>
    %226 = tpu.matmul %221, %223, %cst_88 {dimension_numbers = #tpu.dot_dimension_numbers<[2], [2], [1], [1], [0, 0, 0, 1, 1, 1], [0], [0]>} : vector<2x8x16xf32>, vector<2x8x16xf32>, vector<2x8x8xf32> -> vector<2x8x8xf32>
    "tpu.trace_stop"() : () -> ()
    %cst_89 = arith.constant 2.500000e-01 : f32
    %227 = vector.broadcast %cst_89 : f32 to vector<2x8x8xf32>
    %228 = arith.mulf %226, %227 : vector<2x8x8xf32>
    %cst_90 = arith.constant dense<0xFF800000> : vector<2x8xf32>
    %229 = vector.multi_reduction <maximumf>, %228, %cst_90 [2] : vector<2x8x8xf32> to vector<2x8xf32>
    %230 = vector.shape_cast %229 : vector<2x8xf32> to vector<2x8x1xf32>
    %231 = vector.broadcast %230 : vector<2x8x1xf32> to vector<2x8x8xf32>
    %232 = arith.subf %228, %231 : vector<2x8x8xf32>
    %233 = math.exp %232 : vector<2x8x8xf32>
    %cst_91 = arith.constant dense<0.000000e+00> : vector<2x8xf32>
    %234 = vector.multi_reduction <add>, %233, %cst_91 [2] : vector<2x8x8xf32> to vector<2x8xf32>
    %235 = vector.shape_cast %234 : vector<2x8xf32> to vector<2x8x1xf32>
    %236 = tpu.reciprocal %235 {approx = true} : vector<2x8x1xf32> -> vector<2x8x1xf32>
    %237 = vector.broadcast %236 : vector<2x8x1xf32> to vector<2x8x8xf32>
    %238 = arith.mulf %233, %237 : vector<2x8x8xf32>
    "tpu.trace_start"() <{level = 10 : i32, message = "bqk,bkd->bqd"}> : () -> ()
    %cst_92 = arith.constant dense<0.000000e+00> : vector<2x8x16xf32>
    %239 = tpu.matmul %238, %225, %cst_92 {dimension_numbers = #tpu.dot_dimension_numbers<[2], [1], [1], [2], [0, 0, 0, 1, 1, 2], [0], [0]>} : vector<2x8x8xf32>, vector<2x8x16xf32>, vector<2x8x16xf32> -> vector<2x8x16xf32>
    "tpu.trace_stop"() : () -> ()
    %240 = vector.shape_cast %239 : vector<2x8x16xf32> to vector<16x16xf32>
    %241 = vector.extract_strided_slice %177 {offsets = [0, 48], sizes = [16, 16], strides = [1, 1]} : vector<16x192xf32> to vector<16x16xf32>
    %242 = vector.shape_cast %241 : vector<16x16xf32> to vector<2x8x16xf32>
    %243 = vector.extract_strided_slice %177 {offsets = [0, 112], sizes = [16, 16], strides = [1, 1]} : vector<16x192xf32> to vector<16x16xf32>
    %244 = vector.shape_cast %243 : vector<16x16xf32> to vector<2x8x16xf32>
    %245 = vector.extract_strided_slice %177 {offsets = [0, 176], sizes = [16, 16], strides = [1, 1]} : vector<16x192xf32> to vector<16x16xf32>
    %246 = vector.shape_cast %245 : vector<16x16xf32> to vector<2x8x16xf32>
    "tpu.trace_start"() <{level = 10 : i32, message = "bqd,bkd->bqk"}> : () -> ()
    %cst_93 = arith.constant dense<0.000000e+00> : vector<2x8x8xf32>
    %247 = tpu.matmul %242, %244, %cst_93 {dimension_numbers = #tpu.dot_dimension_numbers<[2], [2], [1], [1], [0, 0, 0, 1, 1, 1], [0], [0]>} : vector<2x8x16xf32>, vector<2x8x16xf32>, vector<2x8x8xf32> -> vector<2x8x8xf32>
    "tpu.trace_stop"() : () -> ()
    %cst_94 = arith.constant 2.500000e-01 : f32
    %248 = vector.broadcast %cst_94 : f32 to vector<2x8x8xf32>
    %249 = arith.mulf %247, %248 : vector<2x8x8xf32>
    %cst_95 = arith.constant dense<0xFF800000> : vector<2x8xf32>
    %250 = vector.multi_reduction <maximumf>, %249, %cst_95 [2] : vector<2x8x8xf32> to vector<2x8xf32>
    %251 = vector.shape_cast %250 : vector<2x8xf32> to vector<2x8x1xf32>
    %252 = vector.broadcast %251 : vector<2x8x1xf32> to vector<2x8x8xf32>
    %253 = arith.subf %249, %252 : vector<2x8x8xf32>
    %254 = math.exp %253 : vector<2x8x8xf32>
    %cst_96 = arith.constant dense<0.000000e+00> : vector<2x8xf32>
    %255 = vector.multi_reduction <add>, %254, %cst_96 [2] : vector<2x8x8xf32> to vector<2x8xf32>
    %256 = vector.shape_cast %255 : vector<2x8xf32> to vector<2x8x1xf32>
    %257 = tpu.reciprocal %256 {approx = true} : vector<2x8x1xf32> -> vector<2x8x1xf32>
    %258 = vector.broadcast %257 : vector<2x8x1xf32> to vector<2x8x8xf32>
    %259 = arith.mulf %254, %258 : vector<2x8x8xf32>
    "tpu.trace_start"() <{level = 10 : i32, message = "bqk,bkd->bqd"}> : () -> ()
    %cst_97 = arith.constant dense<0.000000e+00> : vector<2x8x16xf32>
    %260 = tpu.matmul %259, %246, %cst_97 {dimension_numbers = #tpu.dot_dimension_numbers<[2], [1], [1], [2], [0, 0, 0, 1, 1, 2], [0], [0]>} : vector<2x8x8xf32>, vector<2x8x16xf32>, vector<2x8x16xf32> -> vector<2x8x16xf32>
    "tpu.trace_stop"() : () -> ()
    %261 = vector.shape_cast %260 : vector<2x8x16xf32> to vector<16x16xf32>
    %262 = tpu.concatenate %198, %219, %240, %261 in 1 : vector<16x16xf32>, vector<16x16xf32>, vector<16x16xf32>, vector<16x16xf32> -> vector<16x64xf32>
    %c1_98 = arith.constant 1 : index
    %c0_99 = arith.constant 0 : index
    %c0_100 = arith.constant 0 : index
    %263 = vector.load %arg4[%c1_98, %c0_99, %c0_100] : memref<2x64x64xf32, #tpu.memory_space<vmem>>, vector<1x64x64xf32>
    %264 = vector.shape_cast %263 : vector<1x64x64xf32> to vector<64x64xf32>
    %cst_101 = arith.constant dense<0.000000e+00> : vector<16x64xf32>
    %265 = tpu.matmul %262, %264, %cst_101 {dimension_numbers = #tpu.dot_dimension_numbers<[1], [0], [0], [1], [0, 0, 1, 1], [], []>} : vector<16x64xf32>, vector<64x64xf32>, vector<16x64xf32> -> vector<16x64xf32>
    %c1_102 = arith.constant 1 : index
    %c0_103 = arith.constant 0 : index
    %c0_104 = arith.constant 0 : index
    %266 = vector.load %arg5[%c1_102, %c0_103, %c0_104] : memref<2x1x64xf32, #tpu.memory_space<vmem>>, vector<1x1x64xf32>
    %267 = vector.shape_cast %266 : vector<1x1x64xf32> to vector<1x64xf32>
    %268 = vector.broadcast %267 : vector<1x64xf32> to vector<16x64xf32>
    %269 = arith.addf %265, %268 : vector<16x64xf32>
    %270 = arith.addf %170, %269 : vector<16x64xf32>
    %c1_105 = arith.constant 1 : index
    %c0_106 = arith.constant 0 : index
    %c0_107 = arith.constant 0 : index
    %271 = vector.load %arg10[%c1_105, %c0_106, %c0_107] : memref<2x1x64xf32, #tpu.memory_space<vmem>>, vector<1x1x64xf32>
    %272 = vector.shape_cast %271 : vector<1x1x64xf32> to vector<1x64xf32>
    %c1_108 = arith.constant 1 : index
    %c0_109 = arith.constant 0 : index
    %c0_110 = arith.constant 0 : index
    %273 = vector.load %arg11[%c1_108, %c0_109, %c0_110] : memref<2x1x64xf32, #tpu.memory_space<vmem>>, vector<1x1x64xf32>
    %274 = vector.shape_cast %273 : vector<1x1x64xf32> to vector<1x64xf32>
    %cst_111 = arith.constant dense<0.000000e+00> : vector<16xf32>
    %275 = vector.multi_reduction <add>, %270, %cst_111 [1] : vector<16x64xf32> to vector<16xf32>
    %276 = vector.shape_cast %275 : vector<16xf32> to vector<16x1xf32>
    %cst_112 = arith.constant 6.400000e+01 : f32
    %277 = vector.broadcast %cst_112 : f32 to vector<16x1xf32>
    %278 = arith.divf %276, %277 : vector<16x1xf32>
    %279 = vector.broadcast %278 : vector<16x1xf32> to vector<16x64xf32>
    %280 = arith.subf %270, %279 : vector<16x64xf32>
    %281 = arith.mulf %280, %280 : vector<16x64xf32>
    %cst_113 = arith.constant dense<0.000000e+00> : vector<16xf32>
    %282 = vector.multi_reduction <add>, %281, %cst_113 [1] : vector<16x64xf32> to vector<16xf32>
    %283 = vector.shape_cast %282 : vector<16xf32> to vector<16x1xf32>
    %cst_114 = arith.constant 6.400000e+01 : f32
    %284 = vector.broadcast %cst_114 : f32 to vector<16x1xf32>
    %285 = arith.divf %283, %284 : vector<16x1xf32>
    %286 = vector.broadcast %278 : vector<16x1xf32> to vector<16x64xf32>
    %287 = arith.subf %270, %286 : vector<16x64xf32>
    %cst_115 = arith.constant 9.99999974E-6 : f32
    %288 = vector.broadcast %cst_115 : f32 to vector<16x1xf32>
    %289 = arith.addf %285, %288 : vector<16x1xf32>
    %290 = math.rsqrt %289 : vector<16x1xf32>
    %291 = vector.broadcast %290 : vector<16x1xf32> to vector<16x64xf32>
    %292 = arith.mulf %287, %291 : vector<16x64xf32>
    %293 = vector.broadcast %272 : vector<1x64xf32> to vector<16x64xf32>
    %294 = arith.mulf %292, %293 : vector<16x64xf32>
    %295 = vector.broadcast %274 : vector<1x64xf32> to vector<16x64xf32>
    %296 = arith.addf %294, %295 : vector<16x64xf32>
    %c1_116 = arith.constant 1 : index
    %c0_117 = arith.constant 0 : index
    %c0_118 = arith.constant 0 : index
    %297 = vector.load %arg6[%c1_116, %c0_117, %c0_118] : memref<2x64x128xf32, #tpu.memory_space<vmem>>, vector<1x64x128xf32>
    %298 = vector.shape_cast %297 : vector<1x64x128xf32> to vector<64x128xf32>
    %cst_119 = arith.constant dense<0.000000e+00> : vector<16x128xf32>
    %299 = tpu.matmul %296, %298, %cst_119 {dimension_numbers = #tpu.dot_dimension_numbers<[1], [0], [0], [1], [0, 0, 1, 1], [], []>} : vector<16x64xf32>, vector<64x128xf32>, vector<16x128xf32> -> vector<16x128xf32>
    %c1_120 = arith.constant 1 : index
    %c0_121 = arith.constant 0 : index
    %c0_122 = arith.constant 0 : index
    %300 = vector.load %arg7[%c1_120, %c0_121, %c0_122] : memref<2x1x128xf32, #tpu.memory_space<vmem>>, vector<1x1x128xf32>
    %301 = vector.shape_cast %300 : vector<1x1x128xf32> to vector<1x128xf32>
    %302 = vector.broadcast %301 : vector<1x128xf32> to vector<16x128xf32>
    %303 = arith.addf %299, %302 : vector<16x128xf32>
    %cst_123 = arith.constant 0.000000e+00 : f32
    %304 = vector.broadcast %cst_123 : f32 to vector<16x128xf32>
    %305 = arith.maximumf %303, %304 : vector<16x128xf32>
    %c1_124 = arith.constant 1 : index
    %c0_125 = arith.constant 0 : index
    %c0_126 = arith.constant 0 : index
    %306 = vector.load %arg8[%c1_124, %c0_125, %c0_126] : memref<2x128x64xf32, #tpu.memory_space<vmem>>, vector<1x128x64xf32>
    %307 = vector.shape_cast %306 : vector<1x128x64xf32> to vector<128x64xf32>
    %cst_127 = arith.constant dense<0.000000e+00> : vector<16x64xf32>
    %308 = tpu.matmul %305, %307, %cst_127 {dimension_numbers = #tpu.dot_dimension_numbers<[1], [0], [0], [1], [0, 0, 1, 1], [], []>} : vector<16x128xf32>, vector<128x64xf32>, vector<16x64xf32> -> vector<16x64xf32>
    %c1_128 = arith.constant 1 : index
    %c0_129 = arith.constant 0 : index
    %c0_130 = arith.constant 0 : index
    %309 = vector.load %arg9[%c1_128, %c0_129, %c0_130] : memref<2x1x64xf32, #tpu.memory_space<vmem>>, vector<1x1x64xf32>
    %310 = vector.shape_cast %309 : vector<1x1x64xf32> to vector<1x64xf32>
    %311 = vector.broadcast %310 : vector<1x64xf32> to vector<16x64xf32>
    %312 = arith.addf %308, %311 : vector<16x64xf32>
    %313 = arith.addf %296, %312 : vector<16x64xf32>
    %c1_131 = arith.constant 1 : index
    %c0_132 = arith.constant 0 : index
    %c0_133 = arith.constant 0 : index
    %314 = vector.load %arg12[%c1_131, %c0_132, %c0_133] : memref<2x1x64xf32, #tpu.memory_space<vmem>>, vector<1x1x64xf32>
    %315 = vector.shape_cast %314 : vector<1x1x64xf32> to vector<1x64xf32>
    %c1_134 = arith.constant 1 : index
    %c0_135 = arith.constant 0 : index
    %c0_136 = arith.constant 0 : index
    %316 = vector.load %arg13[%c1_134, %c0_135, %c0_136] : memref<2x1x64xf32, #tpu.memory_space<vmem>>, vector<1x1x64xf32>
    %317 = vector.shape_cast %316 : vector<1x1x64xf32> to vector<1x64xf32>
    %cst_137 = arith.constant dense<0.000000e+00> : vector<16xf32>
    %318 = vector.multi_reduction <add>, %313, %cst_137 [1] : vector<16x64xf32> to vector<16xf32>
    %319 = vector.shape_cast %318 : vector<16xf32> to vector<16x1xf32>
    %cst_138 = arith.constant 6.400000e+01 : f32
    %320 = vector.broadcast %cst_138 : f32 to vector<16x1xf32>
    %321 = arith.divf %319, %320 : vector<16x1xf32>
    %322 = vector.broadcast %321 : vector<16x1xf32> to vector<16x64xf32>
    %323 = arith.subf %313, %322 : vector<16x64xf32>
    %324 = arith.mulf %323, %323 : vector<16x64xf32>
    %cst_139 = arith.constant dense<0.000000e+00> : vector<16xf32>
    %325 = vector.multi_reduction <add>, %324, %cst_139 [1] : vector<16x64xf32> to vector<16xf32>
    %326 = vector.shape_cast %325 : vector<16xf32> to vector<16x1xf32>
    %cst_140 = arith.constant 6.400000e+01 : f32
    %327 = vector.broadcast %cst_140 : f32 to vector<16x1xf32>
    %328 = arith.divf %326, %327 : vector<16x1xf32>
    %329 = vector.broadcast %321 : vector<16x1xf32> to vector<16x64xf32>
    %330 = arith.subf %313, %329 : vector<16x64xf32>
    %cst_141 = arith.constant 9.99999974E-6 : f32
    %331 = vector.broadcast %cst_141 : f32 to vector<16x1xf32>
    %332 = arith.addf %328, %331 : vector<16x1xf32>
    %333 = math.rsqrt %332 : vector<16x1xf32>
    %334 = vector.broadcast %333 : vector<16x1xf32> to vector<16x64xf32>
    %335 = arith.mulf %330, %334 : vector<16x64xf32>
    %336 = vector.broadcast %315 : vector<1x64xf32> to vector<16x64xf32>
    %337 = arith.mulf %335, %336 : vector<16x64xf32>
    %338 = vector.broadcast %317 : vector<1x64xf32> to vector<16x64xf32>
    %339 = arith.addf %337, %338 : vector<16x64xf32>
    %340 = vector.shape_cast %339 : vector<16x64xf32> to vector<2x8x64xf32>
    %341 = vector.extract_strided_slice %340 {offsets = [0, 7, 0], sizes = [2, 1, 64], strides = [1, 1, 1]} : vector<2x8x64xf32> to vector<2x1x64xf32>
    %342 = vector.shape_cast %341 : vector<2x1x64xf32> to vector<2x64xf32>
    %c0_142 = arith.constant 0 : index
    %c0_143 = arith.constant 0 : index
    %343 = vector.load %arg14[%c0_142, %c0_143] : memref<2x64xf32, #tpu.memory_space<vmem>>, vector<2x64xf32>
    tpu.vector_store %arg14[%c0_142, %c0_143], %342 {strides = array<i32>} : memref<2x64xf32, #tpu.memory_space<vmem>>, vector<2x64xf32>,
    return
  }
  func.func @transform_0(%arg0: i32) -> (i32, i32, i32) {
    %c0_i32 = arith.constant 0 : i32
    %c0_i32_0 = arith.constant 0 : i32
    %c0_i32_1 = arith.constant 0 : i32
    return %arg0, %c0_i32, %c0_i32_0 : i32, i32, i32
  }
  func.func @transform_1(%arg0: i32) -> (i32, i32, i32) {
    %c0_i32 = arith.constant 0 : i32
    %c0_i32_0 = arith.constant 0 : i32
    %c0_i32_1 = arith.constant 0 : i32
    %c0_i32_2 = arith.constant 0 : i32
    return %c0_i32, %c0_i32_0, %c0_i32_1 : i32, i32, i32
  }
  func.func @transform_2(%arg0: i32) -> (i32, i32, i32) {
    %c0_i32 = arith.constant 0 : i32
    %c0_i32_0 = arith.constant 0 : i32
    %c0_i32_1 = arith.constant 0 : i32
    %c0_i32_2 = arith.constant 0 : i32
    return %c0_i32, %c0_i32_0, %c0_i32_1 : i32, i32, i32
  }
  func.func @transform_3(%arg0: i32) -> (i32, i32, i32) {
    %c0_i32 = arith.constant 0 : i32
    %c0_i32_0 = arith.constant 0 : i32
    %c0_i32_1 = arith.constant 0 : i32
    %c0_i32_2 = arith.constant 0 : i32
    return %c0_i32, %c0_i32_0, %c0_i32_1 : i32, i32, i32
  }
  func.func @transform_4(%arg0: i32) -> (i32, i32, i32) {
    %c0_i32 = arith.constant 0 : i32
    %c0_i32_0 = arith.constant 0 : i32
    %c0_i32_1 = arith.constant 0 : i32
    %c0_i32_2 = arith.constant 0 : i32
    return %c0_i32, %c0_i32_0, %c0_i32_1 : i32, i32, i32
  }
  func.func @transform_5(%arg0: i32) -> (i32, i32, i32) {
    %c0_i32 = arith.constant 0 : i32
    %c0_i32_0 = arith.constant 0 : i32
    %c0_i32_1 = arith.constant 0 : i32
    %c0_i32_2 = arith.constant 0 : i32
    return %c0_i32, %c0_i32_0, %c0_i32_1 : i32, i32, i32
  }
  func.func @transform_6(%arg0: i32) -> (i32, i32, i32) {
    %c0_i32 = arith.constant 0 : i32
    %c0_i32_0 = arith.constant 0 : i32
    %c0_i32_1 = arith.constant 0 : i32
    %c0_i32_2 = arith.constant 0 : i32
    return %c0_i32, %c0_i32_0, %c0_i32_1 : i32, i32, i32
  }
  func.func @transform_7(%arg0: i32) -> (i32, i32, i32) {
    %c0_i32 = arith.constant 0 : i32
    %c0_i32_0 = arith.constant 0 : i32
    %c0_i32_1 = arith.constant 0 : i32
    %c0_i32_2 = arith.constant 0 : i32
    return %c0_i32, %c0_i32_0, %c0_i32_1 : i32, i32, i32
  }
  func.func @transform_8(%arg0: i32) -> (i32, i32, i32) {
    %c0_i32 = arith.constant 0 : i32
    %c0_i32_0 = arith.constant 0 : i32
    %c0_i32_1 = arith.constant 0 : i32
    %c0_i32_2 = arith.constant 0 : i32
    return %c0_i32, %c0_i32_0, %c0_i32_1 : i32, i32, i32
  }
  func.func @transform_9(%arg0: i32) -> (i32, i32, i32) {
    %c0_i32 = arith.constant 0 : i32
    %c0_i32_0 = arith.constant 0 : i32
    %c0_i32_1 = arith.constant 0 : i32
    %c0_i32_2 = arith.constant 0 : i32
    return %c0_i32, %c0_i32_0, %c0_i32_1 : i32, i32, i32
  }
  func.func @transform_10(%arg0: i32) -> (i32, i32, i32) {
    %c0_i32 = arith.constant 0 : i32
    %c0_i32_0 = arith.constant 0 : i32
    %c0_i32_1 = arith.constant 0 : i32
    %c0_i32_2 = arith.constant 0 : i32
    return %c0_i32, %c0_i32_0, %c0_i32_1 : i32, i32, i32
  }
  func.func @transform_11(%arg0: i32) -> (i32, i32, i32) {
    %c0_i32 = arith.constant 0 : i32
    %c0_i32_0 = arith.constant 0 : i32
    %c0_i32_1 = arith.constant 0 : i32
    %c0_i32_2 = arith.constant 0 : i32
    return %c0_i32, %c0_i32_0, %c0_i32_1 : i32, i32, i32
  }
  func.func @transform_12(%arg0: i32) -> (i32, i32, i32) {
    %c0_i32 = arith.constant 0 : i32
    %c0_i32_0 = arith.constant 0 : i32
    %c0_i32_1 = arith.constant 0 : i32
    %c0_i32_2 = arith.constant 0 : i32
    return %c0_i32, %c0_i32_0, %c0_i32_1 : i32, i32, i32
  }
  func.func @transform_13(%arg0: i32) -> (i32, i32) {
    %c0_i32 = arith.constant 0 : i32
    %c0_i32_0 = arith.constant 0 : i32
    return %arg0, %c0_i32 : i32, i32
  }
}

</mosaic_0001>

<llo_original>
// kernel: tpu_custom_call.1
$region0: #{tpu_custom_call.1}
  #allocation0 [shape = 'u32[]', space=smem, size = 0x4, offset = 0x4, fixed_abs, tag = 'smem constant byte address 0x4 - core index']
  #allocation1 [shape = 'u32[72,128]{1,0:T(1,128)}', space=vmem, size = 0x9000, scoped, tag = 'internal scratch']
  %s0 = inlined_call_operand.hbm [shape: f32[2,8,64], index: 0, kind: input, shape index: {}]
  %s1 = inlined_call_operand.vmem [shape: f32[2,64,192], index: 1, kind: input, shape index: {}]
  %s2 = inlined_call_operand.hbm [shape: f32[2,1,192], index: 2, kind: input, shape index: {}]
  %s3 = inlined_call_operand.vmem [shape: f32[2,64,64], index: 3, kind: input, shape index: {}]
  %s4 = inlined_call_operand.hbm [shape: f32[2,1,64], index: 4, kind: input, shape index: {}]
  %s5 = inlined_call_operand.hbm [shape: f32[2,64,128], index: 5, kind: input, shape index: {}]
  %s6 = inlined_call_operand.vmem [shape: f32[2,1,128], index: 6, kind: input, shape index: {}]
  %s7 = inlined_call_operand.vmem [shape: f32[2,128,64], index: 7, kind: input, shape index: {}]
  %s8 = inlined_call_operand.vmem [shape: f32[2,1,64], index: 8, kind: input, shape index: {}]
  %s9 = inlined_call_operand.hbm [shape: f32[2,1,64], index: 9, kind: input, shape index: {}]
  %s10 = inlined_call_operand.vmem [shape: f32[2,1,64], index: 10, kind: input, shape index: {}]
  %s11 = inlined_call_operand.vmem [shape: f32[2,1,64], index: 11, kind: input, shape index: {}]
  %s12 = inlined_call_operand.hbm [shape: f32[2,1,64], index: 12, kind: input, shape index: {}]
  %s13 = inlined_call_operand.hbm [shape: f32[2,64], index: 13, kind: output, shape index: {}]
  %s14 = sld [smem:[#allocation0]]
  $region86: #{tpu_custom_call.1} parent=0
    _
  %s16 = ssub.s32 1, %s14
  %s17 = scalar_select 0, %s16, %s14
  $region1: #{tpu_custom_call.1} parent=0
    #allocation2 [shape = 'u8[8192]{0}', space=vmem, size = 0x2000, scoped, tag = 'input window, operand 0, single buffered']
    #allocation3 [shape = 's32[1]{0}', space=sflag, size = 0x4, scoped, tag = 'scoped memory for tpu_custom_call.1']
    #allocation4 [shape = 's32[1]{0}', space=sflag, size = 0x4, scoped, tag = 'scoped memory for tpu_custom_call.1']
    #allocation5 [shape = 'u8[2048]{0}', space=vmem, size = 0x800, scoped, tag = 'input window, operand 2, single buffered']
    #allocation6 [shape = 's32[1]{0}', space=sflag, size = 0x4, scoped, tag = 'scoped memory for tpu_custom_call.1']
    #allocation7 [shape = 'u8[1024]{0}', space=vmem, size = 0x400, scoped, tag = 'input window, operand 4, single buffered']
    #allocation8 [shape = 'u8[65536]{0}', space=vmem, size = 0x10000, scoped, tag = 'input window, operand 5, single buffered']
    #allocation9 [shape = 's32[1]{0}', space=sflag, size = 0x4, scoped, tag = 'scoped memory for tpu_custom_call.1']
    #allocation10 [shape = 'u8[1024]{0}', space=vmem, size = 0x400, scoped, tag = 'input window, operand 9, single buffered']
    #allocation11 [shape = 'u8[1024]{0}', space=vmem, size = 0x400, scoped, tag = 'input window, operand 12, single buffered']
    #allocation12 [shape = 's32[1]{0}', space=sflag, size = 0x4, scoped, tag = 'scoped memory for tpu_custom_call.1']
    #allocation13 [shape = 'u8[1024]{0}', space=vmem, size = 0x400, scoped, tag = 'output window, operand 0, single buffered']
    %18 = vsyncpa [#allocation3], 0
    %19 = vsyncpa [#allocation6], 0
    %20 = vsyncpa [#allocation9], 0
    %21 = vsyncpa [#allocation12], 0
    %22 = vsyncpa [#allocation4], 0
    // Predicated region
    $region2: #{tpu_custom_call.1} parent=1 // pred_check
      _
    $region3: #{tpu_custom_call.1} parent=1 // pred_check_branch
      %24 = sbr.rel (0) target = $region5
    $region4: #{tpu_custom_call.1} parent=1 // pred_region
      %26 = vsyncadd [#allocation3], 0
      %s27 = sshll.u32 %s0, 4
      %s28 = int_to_ptr.hbm [resolvable:$true] %s27
      %s29 = sshll.u32 [#allocation2], 4
      %s30 = int_to_ptr.vmem [resolvable:$true] %s29
      %35 = dma.hbm_to_vmem [thread:$0]  %s28, 256, %s30, [#allocation3], 128, 128, 8
    $region5: #{tpu_custom_call.1} parent=1 // pred_fallthru
      _
    // Predicated region
    $region6: #{tpu_custom_call.1} parent=1 // pred_check
      _
    $region7: #{tpu_custom_call.1} parent=1 // pred_check_branch
      %37 = sbr.rel (0) target = $region9
    $region8: #{tpu_custom_call.1} parent=1 // pred_region
      _
    $region9: #{tpu_custom_call.1} parent=1 // pred_fallthru
      _
    // Predicated region
    $region10: #{tpu_custom_call.1} parent=1 // pred_check
      _
    $region11: #{tpu_custom_call.1} parent=1 // pred_check_branch
      %39 = sbr.rel (0) target = $region13
    $region12: #{tpu_custom_call.1} parent=1 // pred_region
      %41 = vsyncadd [#allocation6], 0
      %s42 = sshll.u32 %s2, 4
      %s43 = int_to_ptr.hbm [resolvable:$true] %s42
      %s44 = sshll.u32 [#allocation5], 4
      %s45 = int_to_ptr.vmem [resolvable:$true] %s44
      %50 = dma.hbm_to_vmem [thread:$0]  %s43, 64, %s45, [#allocation6], 32, 32, 2
    $region13: #{tpu_custom_call.1} parent=1 // pred_fallthru
      _
    // Predicated region
    $region14: #{tpu_custom_call.1} parent=1 // pred_check
      _
    $region15: #{tpu_custom_call.1} parent=1 // pred_check_branch
      %52 = sbr.rel (0) target = $region17
    $region16: #{tpu_custom_call.1} parent=1 // pred_region
      _
    $region17: #{tpu_custom_call.1} parent=1 // pred_fallthru
      _
    // Predicated region
    $region18: #{tpu_custom_call.1} parent=1 // pred_check
      _
    $region19: #{tpu_custom_call.1} parent=1 // pred_check_branch
      %54 = sbr.rel (0) target = $region21
    $region20: #{tpu_custom_call.1} parent=1 // pred_region
      %56 = vsyncadd [#allocation6], 0
      %s57 = sshll.u32 %s4, 4
      %s58 = int_to_ptr.hbm [resolvable:$true] %s57
      %s59 = sshll.u32 [#allocation7], 4
      %s60 = int_to_ptr.vmem [resolvable:$true] %s59
      %65 = dma.hbm_to_vmem [thread:$0]  %s58, 32, %s60, [#allocation6], 16, 16, 1
    $region21: #{tpu_custom_call.1} parent=1 // pred_fallthru
      _
    // Predicated region
    $region22: #{tpu_custom_call.1} parent=1 // pred_check
      _
    $region23: #{tpu_custom_call.1} parent=1 // pred_check_branch
      %67 = sbr.rel (0) target = $region25
    $region24: #{tpu_custom_call.1} parent=1 // pred_region
      %69 = vsyncadd [#allocation9], 0
      %s70 = sshll.u32 %s5, 4
      %s71 = int_to_ptr.hbm [resolvable:$true] %s70
      %s72 = sshll.u32 [#allocation8], 4
      %s73 = int_to_ptr.vmem [resolvable:$true] %s72
      %78 = dma.hbm_to_vmem [thread:$0]  %s71, 2048, %s73, [#allocation9], 128, 128, 8
    $region25: #{tpu_custom_call.1} parent=1 // pred_fallthru
      _
    // Predicated region
    $region26: #{tpu_custom_call.1} parent=1 // pred_check
      _
    $region27: #{tpu_custom_call.1} parent=1 // pred_check_branch
      %80 = sbr.rel (0) target = $region29
    $region28: #{tpu_custom_call.1} parent=1 // pred_region
      _
    $region29: #{tpu_custom_call.1} parent=1 // pred_fallthru
      _
    // Predicated region
    $region30: #{tpu_custom_call.1} parent=1 // pred_check
      _
    $region31: #{tpu_custom_call.1} parent=1 // pred_check_branch
      %82 = sbr.rel (0) target = $region33
    $region32: #{tpu_custom_call.1} parent=1 // pred_region
      _
    $region33: #{tpu_custom_call.1} parent=1 // pred_fallthru
      _
    // Predicated region
    $region34: #{tpu_custom_call.1} parent=1 // pred_check
      _
    $region35: #{tpu_custom_call.1} parent=1 // pred_check_branch
      %84 = sbr.rel (0) target = $region37
    $region36: #{tpu_custom_call.1} parent=1 // pred_region
      _
    $region37: #{tpu_custom_call.1} parent=1 // pred_fallthru
      _
    // Predicated region
    $region38: #{tpu_custom_call.1} parent=1 // pred_check
      _
    $region39: #{tpu_custom_call.1} parent=1 // pred_check_branch
      %86 = sbr.rel (0) target = $region41
    $region40: #{tpu_custom_call.1} parent=1 // pred_region
      %88 = vsyncadd [#allocation9], 0
      %s89 = sshll.u32 %s9, 4
      %s90 = int_to_ptr.hbm [resolvable:$true] %s89
      %s91 = sshll.u32 [#allocation10], 4
      %s92 = int_to_ptr.vmem [resolvable:$true] %s91
      %97 = dma.hbm_to_vmem [thread:$0]  %s90, 32, %s92, [#allocation9], 16, 16, 1
    $region41: #{tpu_custom_call.1} parent=1 // pred_fallthru
      _
    // Predicated region
    $region42: #{tpu_custom_call.1} parent=1 // pred_check
      _
    $region43: #{tpu_custom_call.1} parent=1 // pred_check_branch
      %99 = sbr.rel (0) target = $region45
    $region44: #{tpu_custom_call.1} parent=1 // pred_region
      _
    $region45: #{tpu_custom_call.1} parent=1 // pred_fallthru
      _
    // Predicated region
    $region46: #{tpu_custom_call.1} parent=1 // pred_check
      _
    $region47: #{tpu_custom_call.1} parent=1 // pred_check_branch
      %101 = sbr.rel (0) target = $region49
    $region48: #{tpu_custom_call.1} parent=1 // pred_region
      _
    $region49: #{tpu_custom_call.1} parent=1 // pred_fallthru
      _
    // Predicated region
    $region50: #{tpu_custom_call.1} parent=1 // pred_check
      _
    $region51: #{tpu_custom_call.1} parent=1 // pred_check_branch
      %103 = sbr.rel (0) target = $region53
    $region52: #{tpu_custom_call.1} parent=1 // pred_region
      %105 = vsyncadd [#allocation12], 0
      %s106 = sshll.u32 %s12, 4
      %s107 = int_to_ptr.hbm [resolvable:$true] %s106
      %s108 = sshll.u32 [#allocation11], 4
      %s109 = int_to_ptr.vmem [resolvable:$true] %s108
      %114 = dma.hbm_to_vmem [thread:$0]  %s107, 32, %s109, [#allocation12], 16, 16, 1
    $region53: #{tpu_custom_call.1} parent=1 // pred_fallthru
      _
    // Predicated region
    $region54: #{tpu_custom_call.1} parent=1 // pred_check
      _
    $region55: #{tpu_custom_call.1} parent=1 // pred_check_branch
      %116 = sbr.rel (0) target = $region57
    $region56: #{tpu_custom_call.1} parent=1 // pred_region
      %118 = dma.done [#allocation3], 256
    $region57: #{tpu_custom_call.1} parent=1 // pred_fallthru
      _
    // Predicated region
    $region58: #{tpu_custom_call.1} parent=1 // pred_check
      _
    $region59: #{tpu_custom_call.1} parent=1 // pred_check_branch
      %120 = sbr.rel (0) target = $region61
    $region60: #{tpu_custom_call.1} parent=1 // pred_region
      %122 = dma.done [#allocation6], 64
    $region61: #{tpu_custom_call.1} parent=1 // pred_fallthru
      _
    // Predicated region
    $region62: #{tpu_custom_call.1} parent=1 // pred_check
      _
    $region63: #{tpu_custom_call.1} parent=1 // pred_check_branch
      %124 = sbr.rel (0) target = $region65
    $region64: #{tpu_custom_call.1} parent=1 // pred_region
      %126 = dma.done [#allocation6], 32
    $region65: #{tpu_custom_call.1} parent=1 // pred_fallthru
      _
    // Predicated region
    $region66: #{tpu_custom_call.1} parent=1 // pred_check
      _
    $region67: #{tpu_custom_call.1} parent=1 // pred_check_branch
      %128 = sbr.rel (0) target = $region69
    $region68: #{tpu_custom_call.1} parent=1 // pred_region
      %130 = dma.done [#allocation9], 2048
    $region69: #{tpu_custom_call.1} parent=1 // pred_fallthru
      _
    // Predicated region
    $region70: #{tpu_custom_call.1} parent=1 // pred_check
      _
    $region71: #{tpu_custom_call.1} parent=1 // pred_check_branch
      %132 = sbr.rel (0) target = $region73
    $region72: #{tpu_custom_call.1} parent=1 // pred_region
      %134 = dma.done [#allocation9], 32
    $region73: #{tpu_custom_call.1} parent=1 // pred_fallthru
      _
    // Predicated region
    $region74: #{tpu_custom_call.1} parent=1 // pred_check
      _
    $region75: #{tpu_custom_call.1} parent=1 // pred_check_branch
      %136 = sbr.rel (0) target = $region77
    $region76: #{tpu_custom_call.1} parent=1 // pred_region
      %138 = dma.done [#allocation12], 32
    $region77: #{tpu_custom_call.1} parent=1 // pred_fallthru
      _
    %v139 = vld [vmem:[#allocation2] sm:$0xff]
    %v140 = vld [vmem:[#allocation2 + $0x8] sm:$0xff]
    %v141 = vld [vmem:[%s1] sm:$0xff]
    %v142 = vld [vmem:[%s1 + $0x8] sm:$0xff]
    %v143 = vld [vmem:[%s1 + $0x10] sm:$0xff]
    %v144 = vld [vmem:[%s1 + $0x18] sm:$0xff]
    %v145 = vld [vmem:[%s1 + $0x20] sm:$0xff]
    %v146 = vld [vmem:[%s1 + $0x28] sm:$0xff]
    %v147 = vld [vmem:[%s1 + $0x30] sm:$0xff]
    %v148 = vld [vmem:[%s1 + $0x38] sm:$0xff]
    %v149 = vld [vmem:[%s1 + $0x40] sm:$0xff]
    %v150 = vld [vmem:[%s1 + $0x48] sm:$0xff]
    %v151 = vld [vmem:[%s1 + $0x50] sm:$0xff]
    %v152 = vld [vmem:[%s1 + $0x58] sm:$0xff]
    %v153 = vld [vmem:[%s1 + $0x60] sm:$0xff]
    %v154 = vld [vmem:[%s1 + $0x68] sm:$0xff]
    %v155 = vld [vmem:[%s1 + $0x70] sm:$0xff]
    %v156 = vld [vmem:[%s1 + $0x78] sm:$0xff]
    %v157 = vld [vmem:[#allocation5] sm:$0x3]
    %v159 = vperm.slane %v157, 0
    %v160 = vperm.slane %v157, 1
    %vm163 = vcmask 523264
    %v165 = vsel %vm163, %v139, 0
    %v168 = vsel %vm163, %v140, 0
    %170 = vmatpush.msra.mxu0 0.0
    %171 = vmatpush.msra.mxu0 0.0
    %172 = vmatpush.msra.mxu0 0.0
    %173 = vmatpush.msra.mxu0 0.0
    %174 = vmatpush.msra.mxu0 0.0
    %175 = vmatpush.msra.mxu0 0.0
    %176 = vmatpush.msra.mxu0 0.0
    %177 = vmatpush.msra.mxu0 0.0
    %178 = vmatpush.msra.mxu0 %v155
    %179 = vmatpush.msra.mxu0 %v153
    %180 = vmatpush.msra.mxu0 %v151
    %181 = vmatpush.msra.mxu0 %v149
    %182 = vmatpush.msra.mxu0 %v147
    %183 = vmatpush.msra.mxu0 %v145
    %184 = vmatpush.msra.mxu0 %v143
    %185 = vmatpush.msra.mxu0 %v141
    %186 = vmatmul.f32.gmra.mxu0 %v165
    %v187 = vpop.f32.mrf.mxu0
    %v188 = vadd.f32 %v159, %v187
    %189 = vmatmul.f32.gmra.mxu0 %v168
    %v190 = vpop.f32.mrf.mxu0
    %v191 = vadd.f32 %v159, %v190
    %192 = vdwg.mxu0
    %193 = vmatpush.msra.mxu0 0.0
    %194 = vmatpush.msra.mxu0 0.0
    %195 = vmatpush.msra.mxu0 0.0
    %196 = vmatpush.msra.mxu0 0.0
    %197 = vmatpush.msra.mxu0 0.0
    %198 = vmatpush.msra.mxu0 0.0
    %199 = vmatpush.msra.mxu0 0.0
    %200 = vmatpush.msra.mxu0 0.0
    %201 = vmatpush.msra.mxu0 %v156
    %202 = vmatpush.msra.mxu0 %v154
    %203 = vmatpush.msra.mxu0 %v152
    %204 = vmatpush.msra.mxu0 %v150
    %205 = vmatpush.msra.mxu0 %v148
    %206 = vmatpush.msra.mxu0 %v146
    %207 = vmatpush.msra.mxu0 %v144
    %208 = vmatpush.msra.mxu0 %v142
    %209 = vmatmul.f32.gmra.mxu0 %v165
    %v210 = vpop.f32.mrf.mxu0
    %v211 = vadd.f32 %v160, %v210
    %212 = vmatmul.f32.gmra.mxu0 %v168
    %v213 = vpop.f32.mrf.mxu0
    %v214 = vadd.f32 %v160, %v213
    %215 = vdwg.mxu0
    %217 = vrot.lane.b32.xlu0 %v188, 64
    %v218 = vpop.permute.xlu0 %217
    %vm219 = vcmask 130048
    %v220 = vsel %vm219, %v188, 0
    %v222 = vsel %vm219, %v218, 0
    %224 = vmatpush.xpose.msra.mxu0 0.0
    %225 = vmatpush.xpose.msra.mxu0 0.0
    %226 = vmatpush.xpose.msra.mxu0 0.0
    %227 = vmatpush.xpose.msra.mxu0 0.0
    %228 = vmatpush.xpose.msra.mxu0 0.0
    %229 = vmatpush.xpose.msra.mxu0 0.0
    %230 = vmatpush.xpose.msra.mxu0 0.0
    %231 = vmatpush.xpose.msra.mxu0 0.0
    %232 = vmatpush.xpose.msra.mxu0 0.0
    %233 = vmatpush.xpose.msra.mxu0 0.0
    %234 = vmatpush.xpose.msra.mxu0 0.0
    %235 = vmatpush.xpose.msra.mxu0 0.0
    %236 = vmatpush.xpose.msra.mxu0 0.0
    %237 = vmatpush.xpose.msra.mxu0 0.0
    %238 = vmatpush.xpose.msra.mxu0 0.0
    %239 = vmatpush.xpose.msra.mxu0 %v222
    %240 = vmatmul.f32.gmra.mxu0 %v220
    %v241 = vpop.f32.mrf.mxu0
    %v242 = vadd.f32 0.0, %v241
    %243 = vdwg.mxu0
    %245 = vrot.lane.b32.xlu0 %v191, 64
    %v246 = vpop.permute.xlu0 %245
    %v247 = vsel %vm219, %v191, 0
    %v249 = vsel %vm219, %v246, 0
    %251 = vmatpush.xpose.msra.mxu0 0.0
    %252 = vmatpush.xpose.msra.mxu0 0.0
    %253 = vmatpush.xpose.msra.mxu0 0.0
    %254 = vmatpush.xpose.msra.mxu0 0.0
    %255 = vmatpush.xpose.msra.mxu0 0.0
    %256 = vmatpush.xpose.msra.mxu0 0.0
    %257 = vmatpush.xpose.msra.mxu0 0.0
    %258 = vmatpush.xpose.msra.mxu0 0.0
    %259 = vmatpush.xpose.msra.mxu0 0.0
    %260 = vmatpush.xpose.msra.mxu0 0.0
    %261 = vmatpush.xpose.msra.mxu0 0.0
    %262 = vmatpush.xpose.msra.mxu0 0.0
    %263 = vmatpush.xpose.msra.mxu0 0.0
    %264 = vmatpush.xpose.msra.mxu0 0.0
    %265 = vmatpush.xpose.msra.mxu0 0.0
    %266 = vmatpush.xpose.msra.mxu0 %v249
    %267 = vmatmul.f32.gmra.mxu0 %v247
    %v268 = vpop.f32.mrf.mxu0
    %v269 = vadd.f32 0.0, %v268
    %270 = vdwg.mxu0
    %v271 = vmul.f32 %v242, 0.25
    %v272 = vmul.f32 %v269, 0.25
    %vm273 = vcmask 64512
    %v274 = vsel %vm273, %v271, -inf
    %275 = vmax.xlane.f32.xlu0 %v274
    %v276 = vpop.xlane.xlu0 %275
    %v277 = vsel %vm273, %v272, -inf
    %278 = vmax.xlane.f32.xlu0 %v277
    %v279 = vpop.xlane.xlu0 %278
    %v280 = vsub.f32 %v271, %v276
    %v281 = vsub.f32 %v272, %v279
    %v282 = vmul.f32 %v280, 1.442695
    %v283 = vpow.pop %v282
    %v284 = vmul.f32 %v281, 1.442695
    %v285 = vpow.pop %v284
    %v286 = vsel %vm273, %v283, 0.0
    %287 = vadd.xlane.f32.xlu0 %v286
    %v288 = vpop.xlane.xlu0 %287
    %v289 = vsel %vm273, %v285, 0.0
    %290 = vadd.xlane.f32.xlu0 %v289
    %v291 = vpop.xlane.xlu0 %290
    %v292 = vrcp.pop %v288
    %v293 = vrcp.pop %v291
    %v294 = vmul.f32 %v283, %v292
    %v295 = vmul.f32 %v285, %v293
    %v297 = vsel %vm273, %v294, 0
    %299 = vmatpush.msra.mxu0 0.0
    %300 = vmatpush.msra.mxu0 0.0
    %301 = vmatpush.msra.mxu0 0.0
    %302 = vmatpush.msra.mxu0 0.0
    %303 = vmatpush.msra.mxu0 0.0
    %304 = vmatpush.msra.mxu0 0.0
    %305 = vmatpush.msra.mxu0 0.0
    %306 = vmatpush.msra.mxu0 0.0
    %307 = vmatpush.msra.mxu0 0.0
    %308 = vmatpush.msra.mxu0 0.0
    %309 = vmatpush.msra.mxu0 0.0
    %310 = vmatpush.msra.mxu0 0.0
    %311 = vmatpush.msra.mxu0 0.0
    %312 = vmatpush.msra.mxu0 0.0
    %313 = vmatpush.msra.mxu0 0.0
    %314 = vmatpush.msra.mxu0 %v211
    %315 = vmatmul.f32.gmra.mxu0 %v297
    %v316 = vpop.f32.mrf.mxu0
    %v317 = vadd.f32 0.0, %v316
    %318 = vdwg.mxu0
    %v320 = vsel %vm273, %v295, 0
    %322 = vmatpush.msra.mxu0 0.0
    %323 = vmatpush.msra.mxu0 0.0
    %324 = vmatpush.msra.mxu0 0.0
    %325 = vmatpush.msra.mxu0 0.0
    %326 = vmatpush.msra.mxu0 0.0
    %327 = vmatpush.msra.mxu0 0.0
    %328 = vmatpush.msra.mxu0 0.0
    %329 = vmatpush.msra.mxu0 0.0
    %330 = vmatpush.msra.mxu0 0.0
    %331 = vmatpush.msra.mxu0 0.0
    %332 = vmatpush.msra.mxu0 0.0
    %333 = vmatpush.msra.mxu0 0.0
    %334 = vmatpush.msra.mxu0 0.0
    %335 = vmatpush.msra.mxu0 0.0
    %336 = vmatpush.msra.mxu0 0.0
    %337 = vmatpush.msra.mxu0 %v214
    %338 = vmatmul.f32.gmra.mxu0 %v320
    %v339 = vpop.f32.mrf.mxu0
    %v340 = vadd.f32 0.0, %v339
    %341 = vdwg.mxu0
    %342 = vrot.lane.b32.xlu0 %v188, 112
    %v343 = vpop.permute.xlu0 %342
    %344 = vrot.lane.b32.xlu0 %v188, 48
    %v345 = vpop.permute.xlu0 %344
    %v346 = vsel %vm219, %v343, 0
    %v348 = vsel %vm219, %v345, 0
    %350 = vmatpush.xpose.msra.mxu0 0.0
    %351 = vmatpush.xpose.msra.mxu0 0.0
    %352 = vmatpush.xpose.msra.mxu0 0.0
    %353 = vmatpush.xpose.msra.mxu0 0.0
    %354 = vmatpush.xpose.msra.mxu0 0.0
    %355 = vmatpush.xpose.msra.mxu0 0.0
    %356 = vmatpush.xpose.msra.mxu0 0.0
    %357 = vmatpush.xpose.msra.mxu0 0.0
    %358 = vmatpush.xpose.msra.mxu0 0.0
    %359 = vmatpush.xpose.msra.mxu0 0.0
    %360 = vmatpush.xpose.msra.mxu0 0.0
    %361 = vmatpush.xpose.msra.mxu0 0.0
    %362 = vmatpush.xpose.msra.mxu0 0.0
    %363 = vmatpush.xpose.msra.mxu0 0.0
    %364 = vmatpush.xpose.msra.mxu0 0.0
    %365 = vmatpush.xpose.msra.mxu0 %v348
    %366 = vmatmul.f32.gmra.mxu0 %v346
    %v367 = vpop.f32.mrf.mxu0
    %v368 = vadd.f32 0.0, %v367
    %369 = vdwg.mxu0
    %370 = vrot.lane.b32.xlu0 %v191, 112
    %v371 = vpop.permute.xlu0 %370
    %372 = vrot.lane.b32.xlu0 %v191, 48
    %v373 = vpop.permute.xlu0 %372
    %v374 = vsel %vm219, %v371, 0
    %v376 = vsel %vm219, %v373, 0
    %378 = vmatpush.xpose.msra.mxu0 0.0
    %379 = vmatpush.xpose.msra.mxu0 0.0
    %380 = vmatpush.xpose.msra.mxu0 0.0
    %381 = vmatpush.xpose.msra.mxu0 0.0
    %382 = vmatpush.xpose.msra.mxu0 0.0
    %383 = vmatpush.xpose.msra.mxu0 0.0
    %384 = vmatpush.xpose.msra.mxu0 0.0
    %385 = vmatpush.xpose.msra.mxu0 0.0
    %386 = vmatpush.xpose.msra.mxu0 0.0
    %387 = vmatpush.xpose.msra.mxu0 0.0
    %388 = vmatpush.xpose.msra.mxu0 0.0
    %389 = vmatpush.xpose.msra.mxu0 0.0
    %390 = vmatpush.xpose.msra.mxu0 0.0
    %391 = vmatpush.xpose.msra.mxu0 0.0
    %392 = vmatpush.xpose.msra.mxu0 0.0
    %393 = vmatpush.xpose.msra.mxu0 %v376
    %394 = vmatmul.f32.gmra.mxu0 %v374
    %v395 = vpop.f32.mrf.mxu0
    %v396 = vadd.f32 0.0, %v395
    %397 = vdwg.mxu0
    %v398 = vmul.f32 %v368, 0.25
    %v399 = vmul.f32 %v396, 0.25
    %v400 = vsel %vm273, %v398, -inf
    %401 = vmax.xlane.f32.xlu0 %v400
    %v402 = vpop.xlane.xlu0 %401
    %v403 = vsel %vm273, %v399, -inf
    %404 = vmax.xlane.f32.xlu0 %v403
    %v405 = vpop.xlane.xlu0 %404
    %v406 = vsub.f32 %v398, %v402
    %v407 = vsub.f32 %v399, %v405
    %v408 = vmul.f32 %v406, 1.442695
    %v409 = vpow.pop %v408
    %v410 = vmul.f32 %v407, 1.442695
    %v411 = vpow.pop %v410
    %v412 = vsel %vm273, %v409, 0.0
    %413 = vadd.xlane.f32.xlu0 %v412
    %v414 = vpop.xlane.xlu0 %413
    %v415 = vsel %vm273, %v411, 0.0
    %416 = vadd.xlane.f32.xlu0 %v415
    %v417 = vpop.xlane.xlu0 %416
    %v418 = vrcp.pop %v414
    %v419 = vrcp.pop %v417
    %v420 = vmul.f32 %v409, %v418
    %v421 = vmul.f32 %v411, %v419
    %423 = vrot.lane.b32.xlu0 %v211, 112
    %v424 = vpop.permute.xlu0 %423
    %v427 = vsel %vm273, %v420, 0
    %429 = vmatpush.msra.mxu0 0.0
    %430 = vmatpush.msra.mxu0 0.0
    %431 = vmatpush.msra.mxu0 0.0
    %432 = vmatpush.msra.mxu0 0.0
    %433 = vmatpush.msra.mxu0 0.0
    %434 = vmatpush.msra.mxu0 0.0
    %435 = vmatpush.msra.mxu0 0.0
    %436 = vmatpush.msra.mxu0 0.0
    %437 = vmatpush.msra.mxu0 0.0
    %438 = vmatpush.msra.mxu0 0.0
    %439 = vmatpush.msra.mxu0 0.0
    %440 = vmatpush.msra.mxu0 0.0
    %441 = vmatpush.msra.mxu0 0.0
    %442 = vmatpush.msra.mxu0 0.0
    %443 = vmatpush.msra.mxu0 0.0
    %444 = vmatpush.msra.mxu0 %v424
    %445 = vmatmul.f32.gmra.mxu0 %v427
    %v446 = vpop.f32.mrf.mxu0
    %v447 = vadd.f32 0.0, %v446
    %448 = vdwg.mxu0
    %450 = vrot.lane.b32.xlu0 %v214, 112
    %v451 = vpop.permute.xlu0 %450
    %v454 = vsel %vm273, %v421, 0
    %456 = vmatpush.msra.mxu0 0.0
    %457 = vmatpush.msra.mxu0 0.0
    %458 = vmatpush.msra.mxu0 0.0
    %459 = vmatpush.msra.mxu0 0.0
    %460 = vmatpush.msra.mxu0 0.0
    %461 = vmatpush.msra.mxu0 0.0
    %462 = vmatpush.msra.mxu0 0.0
    %463 = vmatpush.msra.mxu0 0.0
    %464 = vmatpush.msra.mxu0 0.0
    %465 = vmatpush.msra.mxu0 0.0
    %466 = vmatpush.msra.mxu0 0.0
    %467 = vmatpush.msra.mxu0 0.0
    %468 = vmatpush.msra.mxu0 0.0
    %469 = vmatpush.msra.mxu0 0.0
    %470 = vmatpush.msra.mxu0 0.0
    %471 = vmatpush.msra.mxu0 %v451
    %472 = vmatmul.f32.gmra.mxu0 %v454
    %v473 = vpop.f32.mrf.mxu0
    %v474 = vadd.f32 0.0, %v473
    %475 = vdwg.mxu0
    %476 = vrot.lane.b32.xlu0 %v188, 96
    %v477 = vpop.permute.xlu0 %476
    %478 = vrot.lane.b32.xlu0 %v188, 32
    %v479 = vpop.permute.xlu0 %478
    %v480 = vsel %vm219, %v477, 0
    %v482 = vsel %vm219, %v479, 0
    %484 = vmatpush.xpose.msra.mxu0 0.0
    %485 = vmatpush.xpose.msra.mxu0 0.0
    %486 = vmatpush.xpose.msra.mxu0 0.0
    %487 = vmatpush.xpose.msra.mxu0 0.0
    %488 = vmatpush.xpose.msra.mxu0 0.0
    %489 = vmatpush.xpose.msra.mxu0 0.0
    %490 = vmatpush.xpose.msra.mxu0 0.0
    %491 = vmatpush.xpose.msra.mxu0 0.0
    %492 = vmatpush.xpose.msra.mxu0 0.0
    %493 = vmatpush.xpose.msra.mxu0 0.0
    %494 = vmatpush.xpose.msra.mxu0 0.0
    %495 = vmatpush.xpose.msra.mxu0 0.0
    %496 = vmatpush.xpose.msra.mxu0 0.0
    %497 = vmatpush.xpose.msra.mxu0 0.0
    %498 = vmatpush.xpose.msra.mxu0 0.0
    %499 = vmatpush.xpose.msra.mxu0 %v482
    %500 = vmatmul.f32.gmra.mxu0 %v480
    %v501 = vpop.f32.mrf.mxu0
    %v502 = vadd.f32 0.0, %v501
    %503 = vdwg.mxu0
    %504 = vrot.lane.b32.xlu0 %v191, 96
    %v505 = vpop.permute.xlu0 %504
    %506 = vrot.lane.b32.xlu0 %v191, 32
    %v507 = vpop.permute.xlu0 %506
    %v508 = vsel %vm219, %v505, 0
    %v510 = vsel %vm219, %v507, 0
    %512 = vmatpush.xpose.msra.mxu0 0.0
    %513 = vmatpush.xpose.msra.mxu0 0.0
    %514 = vmatpush.xpose.msra.mxu0 0.0
    %515 = vmatpush.xpose.msra.mxu0 0.0
    %516 = vmatpush.xpose.msra.mxu0 0.0
    %517 = vmatpush.xpose.msra.mxu0 0.0
    %518 = vmatpush.xpose.msra.mxu0 0.0
    %519 = vmatpush.xpose.msra.mxu0 0.0
    %520 = vmatpush.xpose.msra.mxu0 0.0
    %521 = vmatpush.xpose.msra.mxu0 0.0
    %522 = vmatpush.xpose.msra.mxu0 0.0
    %523 = vmatpush.xpose.msra.mxu0 0.0
    %524 = vmatpush.xpose.msra.mxu0 0.0
    %525 = vmatpush.xpose.msra.mxu0 0.0
    %526 = vmatpush.xpose.msra.mxu0 0.0
    %527 = vmatpush.xpose.msra.mxu0 %v510
    %528 = vmatmul.f32.gmra.mxu0 %v508
    %v529 = vpop.f32.mrf.mxu0
    %v530 = vadd.f32 0.0, %v529
    %531 = vdwg.mxu0
    %v532 = vmul.f32 %v502, 0.25
    %v533 = vmul.f32 %v530, 0.25
    %v534 = vsel %vm273, %v532, -inf
    %535 = vmax.xlane.f32.xlu0 %v534
    %v536 = vpop.xlane.xlu0 %535
    %v537 = vsel %vm273, %v533, -inf
    %538 = vmax.xlane.f32.xlu0 %v537
    %v539 = vpop.xlane.xlu0 %538
    %v540 = vsub.f32 %v532, %v536
    %v541 = vsub.f32 %v533, %v539
    %v542 = vmul.f32 %v540, 1.442695
    %v543 = vpow.pop %v542
    %v544 = vmul.f32 %v541, 1.442695
    %v545 = vpow.pop %v544
    %v546 = vsel %vm273, %v543, 0.0
    %547 = vadd.xlane.f32.xlu0 %v546
    %v548 = vpop.xlane.xlu0 %547
    %v549 = vsel %vm273, %v545, 0.0
    %550 = vadd.xlane.f32.xlu0 %v549
    %v551 = vpop.xlane.xlu0 %550
    %v552 = vrcp.pop %v548
    %v553 = vrcp.pop %v551
    %v554 = vmul.f32 %v543, %v552
    %v555 = vmul.f32 %v545, %v553
    %556 = vrot.lane.b32.xlu0 %v211, 96
    %v557 = vpop.permute.xlu0 %556
    %v560 = vsel %vm273, %v554, 0
    %562 = vmatpush.msra.mxu0 0.0
    %563 = vmatpush.msra.mxu0 0.0
    %564 = vmatpush.msra.mxu0 0.0
    %565 = vmatpush.msra.mxu0 0.0
    %566 = vmatpush.msra.mxu0 0.0
    %567 = vmatpush.msra.mxu0 0.0
    %568 = vmatpush.msra.mxu0 0.0
    %569 = vmatpush.msra.mxu0 0.0
    %570 = vmatpush.msra.mxu0 0.0
    %571 = vmatpush.msra.mxu0 0.0
    %572 = vmatpush.msra.mxu0 0.0
    %573 = vmatpush.msra.mxu0 0.0
    %574 = vmatpush.msra.mxu0 0.0
    %575 = vmatpush.msra.mxu0 0.0
    %576 = vmatpush.msra.mxu0 0.0
    %577 = vmatpush.msra.mxu0 %v557
    %578 = vmatmul.f32.gmra.mxu0 %v560
    %v579 = vpop.f32.mrf.mxu0
    %v580 = vadd.f32 0.0, %v579
    %581 = vdwg.mxu0
    %582 = vrot.lane.b32.xlu0 %v214, 96
    %v583 = vpop.permute.xlu0 %582
    %v586 = vsel %vm273, %v555, 0
    %588 = vmatpush.msra.mxu0 0.0
    %589 = vmatpush.msra.mxu0 0.0
    %590 = vmatpush.msra.mxu0 0.0
    %591 = vmatpush.msra.mxu0 0.0
    %592 = vmatpush.msra.mxu0 0.0
    %593 = vmatpush.msra.mxu0 0.0
    %594 = vmatpush.msra.mxu0 0.0
    %595 = vmatpush.msra.mxu0 0.0
    %596 = vmatpush.msra.mxu0 0.0
    %597 = vmatpush.msra.mxu0 0.0
    %598 = vmatpush.msra.mxu0 0.0
    %599 = vmatpush.msra.mxu0 0.0
    %600 = vmatpush.msra.mxu0 0.0
    %601 = vmatpush.msra.mxu0 0.0
    %602 = vmatpush.msra.mxu0 0.0
    %603 = vmatpush.msra.mxu0 %v583
    %604 = vmatmul.f32.gmra.mxu0 %v586
    %v605 = vpop.f32.mrf.mxu0
    %v606 = vadd.f32 0.0, %v605
    %607 = vdwg.mxu0
    %608 = vrot.lane.b32.xlu0 %v188, 80
    %v609 = vpop.permute.xlu0 %608
    %610 = vrot.lane.b32.xlu0 %v188, 16
    %v611 = vpop.permute.xlu0 %610
    %v612 = vsel %vm219, %v609, 0
    %v614 = vsel %vm219, %v611, 0
    %616 = vmatpush.xpose.msra.mxu0 0.0
    %617 = vmatpush.xpose.msra.mxu0 0.0
    %618 = vmatpush.xpose.msra.mxu0 0.0
    %619 = vmatpush.xpose.msra.mxu0 0.0
    %620 = vmatpush.xpose.msra.mxu0 0.0
    %621 = vmatpush.xpose.msra.mxu0 0.0
    %622 = vmatpush.xpose.msra.mxu0 0.0
    %623 = vmatpush.xpose.msra.mxu0 0.0
    %624 = vmatpush.xpose.msra.mxu0 0.0
    %625 = vmatpush.xpose.msra.mxu0 0.0
    %626 = vmatpush.xpose.msra.mxu0 0.0
    %627 = vmatpush.xpose.msra.mxu0 0.0
    %628 = vmatpush.xpose.msra.mxu0 0.0
    %629 = vmatpush.xpose.msra.mxu0 0.0
    %630 = vmatpush.xpose.msra.mxu0 0.0
    %631 = vmatpush.xpose.msra.mxu0 %v614
    %632 = vmatmul.f32.gmra.mxu0 %v612
    %v633 = vpop.f32.mrf.mxu0
    %v634 = vadd.f32 0.0, %v633
    %635 = vdwg.mxu0
    %636 = vrot.lane.b32.xlu0 %v191, 80
    %v637 = vpop.permute.xlu0 %636
    %638 = vrot.lane.b32.xlu0 %v191, 16
    %v639 = vpop.permute.xlu0 %638
    %v640 = vsel %vm219, %v637, 0
    %v642 = vsel %vm219, %v639, 0
    %644 = vmatpush.xpose.msra.mxu0 0.0
    %645 = vmatpush.xpose.msra.mxu0 0.0
    %646 = vmatpush.xpose.msra.mxu0 0.0
    %647 = vmatpush.xpose.msra.mxu0 0.0
    %648 = vmatpush.xpose.msra.mxu0 0.0
    %649 = vmatpush.xpose.msra.mxu0 0.0
    %650 = vmatpush.xpose.msra.mxu0 0.0
    %651 = vmatpush.xpose.msra.mxu0 0.0
    %652 = vmatpush.xpose.msra.mxu0 0.0
    %653 = vmatpush.xpose.msra.mxu0 0.0
    %654 = vmatpush.xpose.msra.mxu0 0.0
    %655 = vmatpush.xpose.msra.mxu0 0.0
    %656 = vmatpush.xpose.msra.mxu0 0.0
    %657 = vmatpush.xpose.msra.mxu0 0.0
    %658 = vmatpush.xpose.msra.mxu0 0.0
    %659 = vmatpush.xpose.msra.mxu0 %v642
    %660 = vmatmul.f32.gmra.mxu0 %v640
    %v661 = vpop.f32.mrf.mxu0
    %v662 = vadd.f32 0.0, %v661
    %663 = vdwg.mxu0
    %v664 = vmul.f32 %v634, 0.25
    %v665 = vmul.f32 %v662, 0.25
    %v666 = vsel %vm273, %v664, -inf
    %667 = vmax.xlane.f32.xlu0 %v666
    %v668 = vpop.xlane.xlu0 %667
    %v669 = vsel %vm273, %v665, -inf
    %670 = vmax.xlane.f32.xlu0 %v669
    %v671 = vpop.xlane.xlu0 %670
    %v672 = vsub.f32 %v664, %v668
    %v673 = vsub.f32 %v665, %v671
    %v674 = vmul.f32 %v672, 1.442695
    %v675 = vpow.pop %v674
    %v676 = vmul.f32 %v673, 1.442695
    %v677 = vpow.pop %v676
    %v678 = vsel %vm273, %v675, 0.0
    %679 = vadd.xlane.f32.xlu0 %v678
    %v680 = vpop.xlane.xlu0 %679
    %v681 = vsel %vm273, %v677, 0.0
    %682 = vadd.xlane.f32.xlu0 %v681
    %v683 = vpop.xlane.xlu0 %682
    %v684 = vrcp.pop %v680
    %v685 = vrcp.pop %v683
    %v686 = vmul.f32 %v675, %v684
    %v687 = vmul.f32 %v677, %v685
    %688 = vrot.lane.b32.xlu0 %v211, 80
    %v689 = vpop.permute.xlu0 %688
    %v692 = vsel %vm273, %v686, 0
    %694 = vmatpush.msra.mxu0 0.0
    %695 = vmatpush.msra.mxu0 0.0
    %696 = vmatpush.msra.mxu0 0.0
    %697 = vmatpush.msra.mxu0 0.0
    %698 = vmatpush.msra.mxu0 0.0
    %699 = vmatpush.msra.mxu0 0.0
    %700 = vmatpush.msra.mxu0 0.0
    %701 = vmatpush.msra.mxu0 0.0
    %702 = vmatpush.msra.mxu0 0.0
    %703 = vmatpush.msra.mxu0 0.0
    %704 = vmatpush.msra.mxu0 0.0
    %705 = vmatpush.msra.mxu0 0.0
    %706 = vmatpush.msra.mxu0 0.0
    %707 = vmatpush.msra.mxu0 0.0
    %708 = vmatpush.msra.mxu0 0.0
    %709 = vmatpush.msra.mxu0 %v689
    %710 = vmatmul.f32.gmra.mxu0 %v692
    %v711 = vpop.f32.mrf.mxu0
    %v712 = vadd.f32 0.0, %v711
    %713 = vdwg.mxu0
    %714 = vrot.lane.b32.xlu0 %v214, 80
    %v715 = vpop.permute.xlu0 %714
    %v718 = vsel %vm273, %v687, 0
    %720 = vmatpush.msra.mxu0 0.0
    %721 = vmatpush.msra.mxu0 0.0
    %722 = vmatpush.msra.mxu0 0.0
    %723 = vmatpush.msra.mxu0 0.0
    %724 = vmatpush.msra.mxu0 0.0
    %725 = vmatpush.msra.mxu0 0.0
    %726 = vmatpush.msra.mxu0 0.0
    %727 = vmatpush.msra.mxu0 0.0
    %728 = vmatpush.msra.mxu0 0.0
    %729 = vmatpush.msra.mxu0 0.0
    %730 = vmatpush.msra.mxu0 0.0
    %731 = vmatpush.msra.mxu0 0.0
    %732 = vmatpush.msra.mxu0 0.0
    %733 = vmatpush.msra.mxu0 0.0
    %734 = vmatpush.msra.mxu0 0.0
    %735 = vmatpush.msra.mxu0 %v715
    %736 = vmatmul.f32.gmra.mxu0 %v718
    %v737 = vpop.f32.mrf.mxu0
    %v738 = vadd.f32 0.0, %v737
    %739 = vdwg.mxu0
    %742 = vrot.lane.b32.xlu0 %v447, 16
    %v743 = vpop.permute.xlu0 %742
    %744 = vrot.lane.b32.xlu0 %v474, 16
    %v745 = vpop.permute.xlu0 %744
    %750 = vrot.lane.b32.xlu0 %v580, 32
    %v751 = vpop.permute.xlu0 %750
    %752 = vrot.lane.b32.xlu0 %v606, 32
    %v753 = vpop.permute.xlu0 %752
    %758 = vrot.lane.b32.xlu0 %v712, 48
    %v759 = vpop.permute.xlu0 %758
    %760 = vrot.lane.b32.xlu0 %v738, 48
    %v761 = vpop.permute.xlu0 %760
    %v764 = vsel %vm219, %v317, %v743
    %v765 = vsel %vm219, %v340, %v745
    %vm766 = vcmask 261120
    %v767 = vsel %vm766, %v764, %v751
    %v768 = vsel %vm766, %v765, %v753
    %vm769 = vcmask 392192
    %v770 = vsel %vm769, %v767, %v759
    %v771 = vsel %vm769, %v768, %v761
    %v772 = vld [vmem:[%s3] sm:$0xff]
    %v773 = vld [vmem:[%s3 + $0x8] sm:$0xff]
    %v774 = vld [vmem:[%s3 + $0x10] sm:$0xff]
    %v775 = vld [vmem:[%s3 + $0x18] sm:$0xff]
    %v776 = vld [vmem:[%s3 + $0x20] sm:$0xff]
    %v777 = vld [vmem:[%s3 + $0x28] sm:$0xff]
    %v778 = vld [vmem:[%s3 + $0x30] sm:$0xff]
    %v779 = vld [vmem:[%s3 + $0x38] sm:$0xff]
    %v780 = vld [vmem:[#allocation7] sm:$0x1]
    %v782 = vperm.slane %v780, 0
    %v785 = vsel %vm163, %v770, 0
    %v788 = vsel %vm163, %v771, 0
    %790 = vmatpush.msra.mxu0 0.0
    %791 = vmatpush.msra.mxu0 0.0
    %792 = vmatpush.msra.mxu0 0.0
    %793 = vmatpush.msra.mxu0 0.0
    %794 = vmatpush.msra.mxu0 0.0
    %795 = vmatpush.msra.mxu0 0.0
    %796 = vmatpush.msra.mxu0 0.0
    %797 = vmatpush.msra.mxu0 0.0
    %798 = vmatpush.msra.mxu0 %v779
    %799 = vmatpush.msra.mxu0 %v778
    %800 = vmatpush.msra.mxu0 %v777
    %801 = vmatpush.msra.mxu0 %v776
    %802 = vmatpush.msra.mxu0 %v775
    %803 = vmatpush.msra.mxu0 %v774
    %804 = vmatpush.msra.mxu0 %v773
    %805 = vmatpush.msra.mxu0 %v772
    %806 = vmatmul.f32.gmra.mxu0 %v785
    %v807 = vpop.f32.mrf.mxu0
    %v808 = vadd.f32 %v782, %v807
    %809 = vmatmul.f32.gmra.mxu0 %v788
    %v810 = vpop.f32.mrf.mxu0
    %v811 = vadd.f32 %v782, %v810
    %812 = vdwg.mxu0
    %v813 = vadd.f32 %v139, %v808
    %v814 = vadd.f32 %v140, %v811
    %v815 = vld [vmem:[#allocation10] sm:$0x1]
    %v816 = vld [vmem:[%s10] sm:$0x1]
    %v817 = vsel %vm163, %v813, 0.0
    %818 = vadd.xlane.f32.xlu0 %v817
    %v819 = vpop.xlane.xlu0 %818
    %v820 = vsel %vm163, %v814, 0.0
    %821 = vadd.xlane.f32.xlu0 %v820
    %v822 = vpop.xlane.xlu0 %821
    %v823 = vrcp.pop 64.0
    %v824 = vmul.f32 64.0, %v823
    %v825 = vsub.f32 1.0, %v824
    %v826 = vmul.f32 %v823, %v825
    %v827 = vadd.f32 %v823, %v826
    %vm828 = vweird.f32 %v823
    %v829 = vsel %vm828, %v823, %v827
    %v830 = vmul.f32 %v819, %v829
    %v831 = vmul.f32 %v822, %v829
    %v832 = vsub.f32 %v813, %v830
    %v833 = vsub.f32 %v814, %v831
    %v834 = vmul.f32 %v832, %v832
    %v835 = vmul.f32 %v833, %v833
    %v836 = vsel %vm163, %v834, 0.0
    %837 = vadd.xlane.f32.xlu0 %v836
    %v838 = vpop.xlane.xlu0 %837
    %v839 = vsel %vm163, %v835, 0.0
    %840 = vadd.xlane.f32.xlu0 %v839
    %v841 = vpop.xlane.xlu0 %840
    %v842 = vmul.f32 %v838, %v829
    %v843 = vmul.f32 %v841, %v829
    %v844 = vadd.f32 %v842, 1e-05
    %v845 = vadd.f32 %v843, 1e-05
    %v846 = vrsqrt.pop %v844
    %v847 = vmul.f32 %v846, %v844
    %v848 = vmul.f32 %v847, %v846
    %v849 = vmul.f32 0.5, %v848
    %v850 = vsub.f32 1.5, %v849
    %v851 = vmul.f32 %v846, %v850
    %vm852 = vweird.f32 %v844
    %vm853 = vweird.f32 %v846
    %vm854 = vmor %vm852, %vm853
    %v855 = vsel %vm854, %v846, %v851
    %v856 = vrsqrt.pop %v845
    %v857 = vmul.f32 %v856, %v845
    %v858 = vmul.f32 %v857, %v856
    %v859 = vmul.f32 0.5, %v858
    %v860 = vsub.f32 1.5, %v859
    %v861 = vmul.f32 %v856, %v860
    %vm862 = vweird.f32 %v845
    %vm863 = vweird.f32 %v856
    %vm864 = vmor %vm862, %vm863
    %v865 = vsel %vm864, %v856, %v861
    %v866 = vmul.f32 %v832, %v855
    %v867 = vmul.f32 %v833, %v865
    %v869 = vperm.slane %v815, 0
    %v871 = vmul.f32 %v866, %v869
    %v872 = vmul.f32 %v867, %v869
    %v874 = vperm.slane %v816, 0
    %v876 = vadd.f32 %v871, %v874
    %v877 = vadd.f32 %v872, %v874
    %v878 = vld [vmem:[#allocation8] sm:$0xff]
    %v879 = vld [vmem:[#allocation8 + $0x8] sm:$0xff]
    %v880 = vld [vmem:[#allocation8 + $0x10] sm:$0xff]
    %v881 = vld [vmem:[#allocation8 + $0x18] sm:$0xff]
    %v882 = vld [vmem:[#allocation8 + $0x20] sm:$0xff]
    %v883 = vld [vmem:[#allocation8 + $0x28] sm:$0xff]
    %v884 = vld [vmem:[#allocation8 + $0x30] sm:$0xff]
    %v885 = vld [vmem:[#allocation8 + $0x38] sm:$0xff]
    %v886 = vld [vmem:[%s6] sm:$0x1]
    %v888 = vperm.slane %v886, 0
    %v891 = vsel %vm163, %v876, 0
    %v894 = vsel %vm163, %v877, 0
    %896 = vmatpush.msra.mxu0 0.0
    %897 = vmatpush.msra.mxu0 0.0
    %898 = vmatpush.msra.mxu0 0.0
    %899 = vmatpush.msra.mxu0 0.0
    %900 = vmatpush.msra.mxu0 0.0
    %901 = vmatpush.msra.mxu0 0.0
    %902 = vmatpush.msra.mxu0 0.0
    %903 = vmatpush.msra.mxu0 0.0
    %904 = vmatpush.msra.mxu0 %v885
    %905 = vmatpush.msra.mxu0 %v884
    %906 = vmatpush.msra.mxu0 %v883
    %907 = vmatpush.msra.mxu0 %v882
    %908 = vmatpush.msra.mxu0 %v881
    %909 = vmatpush.msra.mxu0 %v880
    %910 = vmatpush.msra.mxu0 %v879
    %911 = vmatpush.msra.mxu0 %v878
    %912 = vmatmul.f32.gmra.mxu0 %v891
    %v913 = vpop.f32.mrf.mxu0
    %v914 = vadd.f32 %v888, %v913
    %915 = vmatmul.f32.gmra.mxu0 %v894
    %v916 = vpop.f32.mrf.mxu0
    %v917 = vadd.f32 %v888, %v916
    %918 = vdwg.mxu0
    %v919 = vmax.f32 %v914, 0.0
    %v920 = vmax.f32 %v917, 0.0
    %v921 = vld [vmem:[%s7] sm:$0xff]
    %v922 = vld [vmem:[%s7 + $0x8] sm:$0xff]
    %v923 = vld [vmem:[%s7 + $0x10] sm:$0xff]
    %v924 = vld [vmem:[%s7 + $0x18] sm:$0xff]
    %v925 = vld [vmem:[%s7 + $0x20] sm:$0xff]
    %v926 = vld [vmem:[%s7 + $0x28] sm:$0xff]
    %v927 = vld [vmem:[%s7 + $0x30] sm:$0xff]
    %v928 = vld [vmem:[%s7 + $0x38] sm:$0xff]
    %v929 = vld [vmem:[%s7 + $0x40] sm:$0xff]
    %v930 = vld [vmem:[%s7 + $0x48] sm:$0xff]
    %v931 = vld [vmem:[%s7 + $0x50] sm:$0xff]
    %v932 = vld [vmem:[%s7 + $0x58] sm:$0xff]
    %v933 = vld [vmem:[%s7 + $0x60] sm:$0xff]
    %v934 = vld [vmem:[%s7 + $0x68] sm:$0xff]
    %v935 = vld [vmem:[%s7 + $0x70] sm:$0xff]
    %v936 = vld [vmem:[%s7 + $0x78] sm:$0xff]
    %v937 = vld [vmem:[%s8] sm:$0x1]
    %v939 = vperm.slane %v937, 0
    %941 = vmatpush.msra.mxu0 %v936
    %942 = vmatpush.msra.mxu0 %v935
    %943 = vmatpush.msra.mxu0 %v934
    %944 = vmatpush.msra.mxu0 %v933
    %945 = vmatpush.msra.mxu0 %v932
    %946 = vmatpush.msra.mxu0 %v931
    %947 = vmatpush.msra.mxu0 %v930
    %948 = vmatpush.msra.mxu0 %v929
    %949 = vmatpush.msra.mxu0 %v928
    %950 = vmatpush.msra.mxu0 %v927
    %951 = vmatpush.msra.mxu0 %v926
    %952 = vmatpush.msra.mxu0 %v925
    %953 = vmatpush.msra.mxu0 %v924
    %954 = vmatpush.msra.mxu0 %v923
    %955 = vmatpush.msra.mxu0 %v922
    %956 = vmatpush.msra.mxu0 %v921
    %957 = vmatmul.f32.gmra.mxu0 %v919
    %v958 = vpop.f32.mrf.mxu0
    %v959 = vadd.f32 %v939, %v958
    %960 = vmatmul.f32.gmra.mxu0 %v920
    %v961 = vpop.f32.mrf.mxu0
    %v962 = vadd.f32 %v939, %v961
    %963 = vdwg.mxu0
    %v964 = vadd.f32 %v876, %v959
    %v965 = vadd.f32 %v877, %v962
    %v966 = vld [vmem:[%s11] sm:$0x1]
    %v967 = vld [vmem:[#allocation11] sm:$0x1]
    %v968 = vsel %vm163, %v964, 0.0
    %969 = vadd.xlane.f32.xlu0 %v968
    %v970 = vpop.xlane.xlu0 %969
    %v971 = vsel %vm163, %v965, 0.0
    %972 = vadd.xlane.f32.xlu0 %v971
    %v973 = vpop.xlane.xlu0 %972
    %v974 = vmul.f32 %v970, %v829
    %v975 = vmul.f32 %v973, %v829
    %v976 = vsub.f32 %v964, %v974
    %v977 = vsub.f32 %v965, %v975
    %v978 = vmul.f32 %v976, %v976
    %v979 = vmul.f32 %v977, %v977
    %v980 = vsel %vm163, %v978, 0.0
    %981 = vadd.xlane.f32.xlu0 %v980
    %v982 = vpop.xlane.xlu0 %981
    %v983 = vsel %vm163, %v979, 0.0
    %984 = vadd.xlane.f32.xlu0 %v983
    %v985 = vpop.xlane.xlu0 %984
    %v986 = vmul.f32 %v982, %v829
    %v987 = vmul.f32 %v985, %v829
    %v988 = vadd.f32 %v986, 1e-05
    %v989 = vadd.f32 %v987, 1e-05
    %v990 = vrsqrt.pop %v988
    %v991 = vmul.f32 %v990, %v988
    %v992 = vmul.f32 %v991, %v990
    %v993 = vmul.f32 0.5, %v992
    %v994 = vsub.f32 1.5, %v993
    %v995 = vmul.f32 %v990, %v994
    %vm996 = vweird.f32 %v988
    %vm997 = vweird.f32 %v990
    %vm998 = vmor %vm996, %vm997
    %v999 = vsel %vm998, %v990, %v995
    %v1000 = vrsqrt.pop %v989
    %v1001 = vmul.f32 %v1000, %v989
    %v1002 = vmul.f32 %v1001, %v1000
    %v1003 = vmul.f32 0.5, %v1002
    %v1004 = vsub.f32 1.5, %v1003
    %v1005 = vmul.f32 %v1000, %v1004
    %vm1006 = vweird.f32 %v989
    %vm1007 = vweird.f32 %v1000
    %vm1008 = vmor %vm1006, %vm1007
    %v1009 = vsel %vm1008, %v1000, %v1005
    %v1010 = vmul.f32 %v976, %v999
    %v1011 = vmul.f32 %v977, %v1009
    %v1013 = vperm.slane %v966, 0
    %v1015 = vmul.f32 %v1010, %v1013
    %v1016 = vmul.f32 %v1011, %v1013
    %v1018 = vperm.slane %v967, 0
    %v1020 = vadd.f32 %v1015, %v1018
    %v1021 = vadd.f32 %v1016, %v1018
    %s1022 = scalar_lea.vmem %s1, 128
    %v1023 = vld [vmem:[%s1022] sm:$0xff]
    %v1024 = vld [vmem:[%s1022 + $0x8] sm:$0xff]
    %v1025 = vld [vmem:[%s1022 + $0x10] sm:$0xff]
    %v1026 = vld [vmem:[%s1022 + $0x18] sm:$0xff]
    %v1027 = vld [vmem:[%s1022 + $0x20] sm:$0xff]
    %v1028 = vld [vmem:[%s1022 + $0x28] sm:$0xff]
    %v1029 = vld [vmem:[%s1022 + $0x30] sm:$0xff]
    %v1030 = vld [vmem:[%s1022 + $0x38] sm:$0xff]
    %v1031 = vld [vmem:[%s1022 + $0x40] sm:$0xff]
    %v1032 = vld [vmem:[%s1022 + $0x48] sm:$0xff]
    %v1033 = vld [vmem:[%s1022 + $0x50] sm:$0xff]
    %v1034 = vld [vmem:[%s1022 + $0x58] sm:$0xff]
    %v1035 = vld [vmem:[%s1022 + $0x60] sm:$0xff]
    %v1036 = vld [vmem:[%s1022 + $0x68] sm:$0xff]
    %v1037 = vld [vmem:[%s1022 + $0x70] sm:$0xff]
    %v1038 = vld [vmem:[%s1022 + $0x78] sm:$0xff]
    %s1039 = scalar_lea.vmem [#allocation5], 2
    %v1040 = vld [vmem:[%s1039] sm:$0x3]
    %v1042 = vperm.slane %v1040, 0
    %v1043 = vperm.slane %v1040, 1
    %v1047 = vsel %vm163, %v1020, 0
    %v1050 = vsel %vm163, %v1021, 0
    %1052 = vmatpush.msra.mxu0 0.0
    %1053 = vmatpush.msra.mxu0 0.0
    %1054 = vmatpush.msra.mxu0 0.0
    %1055 = vmatpush.msra.mxu0 0.0
    %1056 = vmatpush.msra.mxu0 0.0
    %1057 = vmatpush.msra.mxu0 0.0
    %1058 = vmatpush.msra.mxu0 0.0
    %1059 = vmatpush.msra.mxu0 0.0
    %1060 = vmatpush.msra.mxu0 %v1037
    %1061 = vmatpush.msra.mxu0 %v1035
    %1062 = vmatpush.msra.mxu0 %v1033
    %1063 = vmatpush.msra.mxu0 %v1031
    %1064 = vmatpush.msra.mxu0 %v1029
    %1065 = vmatpush.msra.mxu0 %v1027
    %1066 = vmatpush.msra.mxu0 %v1025
    %1067 = vmatpush.msra.mxu0 %v1023
    %1068 = vmatmul.f32.gmra.mxu0 %v1047
    %v1069 = vpop.f32.mrf.mxu0
    %v1070 = vadd.f32 %v1042, %v1069
    %1071 = vmatmul.f32.gmra.mxu0 %v1050
    %v1072 = vpop.f32.mrf.mxu0
    %v1073 = vadd.f32 %v1042, %v1072
    %1074 = vdwg.mxu0
    %1075 = vmatpush.msra.mxu0 0.0
    %1076 = vmatpush.msra.mxu0 0.0
    %1077 = vmatpush.msra.mxu0 0.0
    %1078 = vmatpush.msra.mxu0 0.0
    %1079 = vmatpush.msra.mxu0 0.0
    %1080 = vmatpush.msra.mxu0 0.0
    %1081 = vmatpush.msra.mxu0 0.0
    %1082 = vmatpush.msra.mxu0 0.0
    %1083 = vmatpush.msra.mxu0 %v1038
    %1084 = vmatpush.msra.mxu0 %v1036
    %1085 = vmatpush.msra.mxu0 %v1034
    %1086 = vmatpush.msra.mxu0 %v1032
    %1087 = vmatpush.msra.mxu0 %v1030
    %1088 = vmatpush.msra.mxu0 %v1028
    %1089 = vmatpush.msra.mxu0 %v1026
    %1090 = vmatpush.msra.mxu0 %v1024
    %1091 = vmatmul.f32.gmra.mxu0 %v1047
    %v1092 = vpop.f32.mrf.mxu0
    %v1093 = vadd.f32 %v1043, %v1092
    %1094 = vmatmul.f32.gmra.mxu0 %v1050
    %v1095 = vpop.f32.mrf.mxu0
    %v1096 = vadd.f32 %v1043, %v1095
    %1097 = vdwg.mxu0
    %1099 = vrot.lane.b32.xlu0 %v1070, 64
    %v1100 = vpop.permute.xlu0 %1099
    %v1101 = vsel %vm219, %v1070, 0
    %v1103 = vsel %vm219, %v1100, 0
    %1105 = vmatpush.xpose.msra.mxu0 0.0
    %1106 = vmatpush.xpose.msra.mxu0 0.0
    %1107 = vmatpush.xpose.msra.mxu0 0.0
    %1108 = vmatpush.xpose.msra.mxu0 0.0
    %1109 = vmatpush.xpose.msra.mxu0 0.0
    %1110 = vmatpush.xpose.msra.mxu0 0.0
    %1111 = vmatpush.xpose.msra.mxu0 0.0
    %1112 = vmatpush.xpose.msra.mxu0 0.0
    %1113 = vmatpush.xpose.msra.mxu0 0.0
    %1114 = vmatpush.xpose.msra.mxu0 0.0
    %1115 = vmatpush.xpose.msra.mxu0 0.0
    %1116 = vmatpush.xpose.msra.mxu0 0.0
    %1117 = vmatpush.xpose.msra.mxu0 0.0
    %1118 = vmatpush.xpose.msra.mxu0 0.0
    %1119 = vmatpush.xpose.msra.mxu0 0.0
    %1120 = vmatpush.xpose.msra.mxu0 %v1103
    %1121 = vmatmul.f32.gmra.mxu0 %v1101
    %v1122 = vpop.f32.mrf.mxu0
    %v1123 = vadd.f32 0.0, %v1122
    %1124 = vdwg.mxu0
    %1126 = vrot.lane.b32.xlu0 %v1073, 64
    %v1127 = vpop.permute.xlu0 %1126
    %v1128 = vsel %vm219, %v1073, 0
    %v1130 = vsel %vm219, %v1127, 0
    %1132 = vmatpush.xpose.msra.mxu0 0.0
    %1133 = vmatpush.xpose.msra.mxu0 0.0
    %1134 = vmatpush.xpose.msra.mxu0 0.0
    %1135 = vmatpush.xpose.msra.mxu0 0.0
    %1136 = vmatpush.xpose.msra.mxu0 0.0
    %1137 = vmatpush.xpose.msra.mxu0 0.0
    %1138 = vmatpush.xpose.msra.mxu0 0.0
    %1139 = vmatpush.xpose.msra.mxu0 0.0
    %1140 = vmatpush.xpose.msra.mxu0 0.0
    %1141 = vmatpush.xpose.msra.mxu0 0.0
    %1142 = vmatpush.xpose.msra.mxu0 0.0
    %1143 = vmatpush.xpose.msra.mxu0 0.0
    %1144 = vmatpush.xpose.msra.mxu0 0.0
    %1145 = vmatpush.xpose.msra.mxu0 0.0
    %1146 = vmatpush.xpose.msra.mxu0 0.0
    %1147 = vmatpush.xpose.msra.mxu0 %v1130
    %1148 = vmatmul.f32.gmra.mxu0 %v1128
    %v1149 = vpop.f32.mrf.mxu0
    %v1150 = vadd.f32 0.0, %v1149
    %1151 = vdwg.mxu0
    %v1152 = vmul.f32 %v1123, 0.25
    %v1153 = vmul.f32 %v1150, 0.25
    %v1154 = vsel %vm273, %v1152, -inf
    %1155 = vmax.xlane.f32.xlu0 %v1154
    %v1156 = vpop.xlane.xlu0 %1155
    %v1157 = vsel %vm273, %v1153, -inf
    %1158 = vmax.xlane.f32.xlu0 %v1157
    %v1159 = vpop.xlane.xlu0 %1158
    %v1160 = vsub.f32 %v1152, %v1156
    %v1161 = vsub.f32 %v1153, %v1159
    %v1162 = vmul.f32 %v1160, 1.442695
    %v1163 = vpow.pop %v1162
    %v1164 = vmul.f32 %v1161, 1.442695
    %v1165 = vpow.pop %v1164
    %v1166 = vsel %vm273, %v1163, 0.0
    %1167 = vadd.xlane.f32.xlu0 %v1166
    %v1168 = vpop.xlane.xlu0 %1167
    %v1169 = vsel %vm273, %v1165, 0.0
    %1170 = vadd.xlane.f32.xlu0 %v1169
    %v1171 = vpop.xlane.xlu0 %1170
    %v1172 = vrcp.pop %v1168
    %v1173 = vrcp.pop %v1171
    %v1174 = vmul.f32 %v1163, %v1172
    %v1175 = vmul.f32 %v1165, %v1173
    %v1177 = vsel %vm273, %v1174, 0
    %1179 = vmatpush.msra.mxu0 0.0
    %1180 = vmatpush.msra.mxu0 0.0
    %1181 = vmatpush.msra.mxu0 0.0
    %1182 = vmatpush.msra.mxu0 0.0
    %1183 = vmatpush.msra.mxu0 0.0
    %1184 = vmatpush.msra.mxu0 0.0
    %1185 = vmatpush.msra.mxu0 0.0
    %1186 = vmatpush.msra.mxu0 0.0
    %1187 = vmatpush.msra.mxu0 0.0
    %1188 = vmatpush.msra.mxu0 0.0
    %1189 = vmatpush.msra.mxu0 0.0
    %1190 = vmatpush.msra.mxu0 0.0
    %1191 = vmatpush.msra.mxu0 0.0
    %1192 = vmatpush.msra.mxu0 0.0
    %1193 = vmatpush.msra.mxu0 0.0
    %1194 = vmatpush.msra.mxu0 %v1093
    %1195 = vmatmul.f32.gmra.mxu0 %v1177
    %v1196 = vpop.f32.mrf.mxu0
    %v1197 = vadd.f32 0.0, %v1196
    %1198 = vdwg.mxu0
    %v1200 = vsel %vm273, %v1175, 0
    %1202 = vmatpush.msra.mxu0 0.0
    %1203 = vmatpush.msra.mxu0 0.0
    %1204 = vmatpush.msra.mxu0 0.0
    %1205 = vmatpush.msra.mxu0 0.0
    %1206 = vmatpush.msra.mxu0 0.0
    %1207 = vmatpush.msra.mxu0 0.0
    %1208 = vmatpush.msra.mxu0 0.0
    %1209 = vmatpush.msra.mxu0 0.0
    %1210 = vmatpush.msra.mxu0 0.0
    %1211 = vmatpush.msra.mxu0 0.0
    %1212 = vmatpush.msra.mxu0 0.0
    %1213 = vmatpush.msra.mxu0 0.0
    %1214 = vmatpush.msra.mxu0 0.0
    %1215 = vmatpush.msra.mxu0 0.0
    %1216 = vmatpush.msra.mxu0 0.0
    %1217 = vmatpush.msra.mxu0 %v1096
    %1218 = vmatmul.f32.gmra.mxu0 %v1200
    %v1219 = vpop.f32.mrf.mxu0
    %v1220 = vadd.f32 0.0, %v1219
    %1221 = vdwg.mxu0
    %1222 = vrot.lane.b32.xlu0 %v1070, 112
    %v1223 = vpop.permute.xlu0 %1222
    %1224 = vrot.lane.b32.xlu0 %v1070, 48
    %v1225 = vpop.permute.xlu0 %1224
    %v1226 = vsel %vm219, %v1223, 0
    %v1228 = vsel %vm219, %v1225, 0
    %1230 = vmatpush.xpose.msra.mxu0 0.0
    %1231 = vmatpush.xpose.msra.mxu0 0.0
    %1232 = vmatpush.xpose.msra.mxu0 0.0
    %1233 = vmatpush.xpose.msra.mxu0 0.0
    %1234 = vmatpush.xpose.msra.mxu0 0.0
    %1235 = vmatpush.xpose.msra.mxu0 0.0
    %1236 = vmatpush.xpose.msra.mxu0 0.0
    %1237 = vmatpush.xpose.msra.mxu0 0.0
    %1238 = vmatpush.xpose.msra.mxu0 0.0
    %1239 = vmatpush.xpose.msra.mxu0 0.0
    %1240 = vmatpush.xpose.msra.mxu0 0.0
    %1241 = vmatpush.xpose.msra.mxu0 0.0
    %1242 = vmatpush.xpose.msra.mxu0 0.0
    %1243 = vmatpush.xpose.msra.mxu0 0.0
    %1244 = vmatpush.xpose.msra.mxu0 0.0
    %1245 = vmatpush.xpose.msra.mxu0 %v1228
    %1246 = vmatmul.f32.gmra.mxu0 %v1226
    %v1247 = vpop.f32.mrf.mxu0
    %v1248 = vadd.f32 0.0, %v1247
    %1249 = vdwg.mxu0
    %1250 = vrot.lane.b32.xlu0 %v1073, 112
    %v1251 = vpop.permute.xlu0 %1250
    %1252 = vrot.lane.b32.xlu0 %v1073, 48
    %v1253 = vpop.permute.xlu0 %1252
    %v1254 = vsel %vm219, %v1251, 0
    %v1256 = vsel %vm219, %v1253, 0
    %1258 = vmatpush.xpose.msra.mxu0 0.0
    %1259 = vmatpush.xpose.msra.mxu0 0.0
    %1260 = vmatpush.xpose.msra.mxu0 0.0
    %1261 = vmatpush.xpose.msra.mxu0 0.0
    %1262 = vmatpush.xpose.msra.mxu0 0.0
    %1263 = vmatpush.xpose.msra.mxu0 0.0
    %1264 = vmatpush.xpose.msra.mxu0 0.0
    %1265 = vmatpush.xpose.msra.mxu0 0.0
    %1266 = vmatpush.xpose.msra.mxu0 0.0
    %1267 = vmatpush.xpose.msra.mxu0 0.0
    %1268 = vmatpush.xpose.msra.mxu0 0.0
    %1269 = vmatpush.xpose.msra.mxu0 0.0
    %1270 = vmatpush.xpose.msra.mxu0 0.0
    %1271 = vmatpush.xpose.msra.mxu0 0.0
    %1272 = vmatpush.xpose.msra.mxu0 0.0
    %1273 = vmatpush.xpose.msra.mxu0 %v1256
    %1274 = vmatmul.f32.gmra.mxu0 %v1254
    %v1275 = vpop.f32.mrf.mxu0
    %v1276 = vadd.f32 0.0, %v1275
    %1277 = vdwg.mxu0
    %v1278 = vmul.f32 %v1248, 0.25
    %v1279 = vmul.f32 %v1276, 0.25
    %v1280 = vsel %vm273, %v1278, -inf
    %1281 = vmax.xlane.f32.xlu0 %v1280
    %v1282 = vpop.xlane.xlu0 %1281
    %v1283 = vsel %vm273, %v1279, -inf
    %1284 = vmax.xlane.f32.xlu0 %v1283
    %v1285 = vpop.xlane.xlu0 %1284
    %v1286 = vsub.f32 %v1278, %v1282
    %v1287 = vsub.f32 %v1279, %v1285
    %v1288 = vmul.f32 %v1286, 1.442695
    %v1289 = vpow.pop %v1288
    %v1290 = vmul.f32 %v1287, 1.442695
    %v1291 = vpow.pop %v1290
    %v1292 = vsel %vm273, %v1289, 0.0
    %1293 = vadd.xlane.f32.xlu0 %v1292
    %v1294 = vpop.xlane.xlu0 %1293
    %v1295 = vsel %vm273, %v1291, 0.0
    %1296 = vadd.xlane.f32.xlu0 %v1295
    %v1297 = vpop.xlane.xlu0 %1296
    %v1298 = vrcp.pop %v1294
    %v1299 = vrcp.pop %v1297
    %v1300 = vmul.f32 %v1289, %v1298
    %v1301 = vmul.f32 %v1291, %v1299
    %1303 = vrot.lane.b32.xlu0 %v1093, 112
    %v1304 = vpop.permute.xlu0 %1303
    %v1307 = vsel %vm273, %v1300, 0
    %1309 = vmatpush.msra.mxu0 0.0
    %1310 = vmatpush.msra.mxu0 0.0
    %1311 = vmatpush.msra.mxu0 0.0
    %1312 = vmatpush.msra.mxu0 0.0
    %1313 = vmatpush.msra.mxu0 0.0
    %1314 = vmatpush.msra.mxu0 0.0
    %1315 = vmatpush.msra.mxu0 0.0
    %1316 = vmatpush.msra.mxu0 0.0
    %1317 = vmatpush.msra.mxu0 0.0
    %1318 = vmatpush.msra.mxu0 0.0
    %1319 = vmatpush.msra.mxu0 0.0
    %1320 = vmatpush.msra.mxu0 0.0
    %1321 = vmatpush.msra.mxu0 0.0
    %1322 = vmatpush.msra.mxu0 0.0
    %1323 = vmatpush.msra.mxu0 0.0
    %1324 = vmatpush.msra.mxu0 %v1304
    %1325 = vmatmul.f32.gmra.mxu0 %v1307
    %v1326 = vpop.f32.mrf.mxu0
    %v1327 = vadd.f32 0.0, %v1326
    %1328 = vdwg.mxu0
    %1330 = vrot.lane.b32.xlu0 %v1096, 112
    %v1331 = vpop.permute.xlu0 %1330
    %v1334 = vsel %vm273, %v1301, 0
    %1336 = vmatpush.msra.mxu0 0.0
    %1337 = vmatpush.msra.mxu0 0.0
    %1338 = vmatpush.msra.mxu0 0.0
    %1339 = vmatpush.msra.mxu0 0.0
    %1340 = vmatpush.msra.mxu0 0.0
    %1341 = vmatpush.msra.mxu0 0.0
    %1342 = vmatpush.msra.mxu0 0.0
    %1343 = vmatpush.msra.mxu0 0.0
    %1344 = vmatpush.msra.mxu0 0.0
    %1345 = vmatpush.msra.mxu0 0.0
    %1346 = vmatpush.msra.mxu0 0.0
    %1347 = vmatpush.msra.mxu0 0.0
    %1348 = vmatpush.msra.mxu0 0.0
    %1349 = vmatpush.msra.mxu0 0.0
    %1350 = vmatpush.msra.mxu0 0.0
    %1351 = vmatpush.msra.mxu0 %v1331
    %1352 = vmatmul.f32.gmra.mxu0 %v1334
    %v1353 = vpop.f32.mrf.mxu0
    %v1354 = vadd.f32 0.0, %v1353
    %1355 = vdwg.mxu0
    %1356 = vrot.lane.b32.xlu0 %v1070, 96
    %v1357 = vpop.permute.xlu0 %1356
    %1358 = vrot.lane.b32.xlu0 %v1070, 32
    %v1359 = vpop.permute.xlu0 %1358
    %v1360 = vsel %vm219, %v1357, 0
    %v1362 = vsel %vm219, %v1359, 0
    %1364 = vmatpush.xpose.msra.mxu0 0.0
    %1365 = vmatpush.xpose.msra.mxu0 0.0
    %1366 = vmatpush.xpose.msra.mxu0 0.0
    %1367 = vmatpush.xpose.msra.mxu0 0.0
    %1368 = vmatpush.xpose.msra.mxu0 0.0
    %1369 = vmatpush.xpose.msra.mxu0 0.0
    %1370 = vmatpush.xpose.msra.mxu0 0.0
    %1371 = vmatpush.xpose.msra.mxu0 0.0
    %1372 = vmatpush.xpose.msra.mxu0 0.0
    %1373 = vmatpush.xpose.msra.mxu0 0.0
    %1374 = vmatpush.xpose.msra.mxu0 0.0
    %1375 = vmatpush.xpose.msra.mxu0 0.0
    %1376 = vmatpush.xpose.msra.mxu0 0.0
    %1377 = vmatpush.xpose.msra.mxu0 0.0
    %1378 = vmatpush.xpose.msra.mxu0 0.0
    %1379 = vmatpush.xpose.msra.mxu0 %v1362
    %1380 = vmatmul.f32.gmra.mxu0 %v1360
    %v1381 = vpop.f32.mrf.mxu0
    %v1382 = vadd.f32 0.0, %v1381
    %1383 = vdwg.mxu0
    %1384 = vrot.lane.b32.xlu0 %v1073, 96
    %v1385 = vpop.permute.xlu0 %1384
    %1386 = vrot.lane.b32.xlu0 %v1073, 32
    %v1387 = vpop.permute.xlu0 %1386
    %v1388 = vsel %vm219, %v1385, 0
    %v1390 = vsel %vm219, %v1387, 0
    %1392 = vmatpush.xpose.msra.mxu0 0.0
    %1393 = vmatpush.xpose.msra.mxu0 0.0
    %1394 = vmatpush.xpose.msra.mxu0 0.0
    %1395 = vmatpush.xpose.msra.mxu0 0.0
    %1396 = vmatpush.xpose.msra.mxu0 0.0
    %1397 = vmatpush.xpose.msra.mxu0 0.0
    %1398 = vmatpush.xpose.msra.mxu0 0.0
    %1399 = vmatpush.xpose.msra.mxu0 0.0
    %1400 = vmatpush.xpose.msra.mxu0 0.0
    %1401 = vmatpush.xpose.msra.mxu0 0.0
    %1402 = vmatpush.xpose.msra.mxu0 0.0
    %1403 = vmatpush.xpose.msra.mxu0 0.0
    %1404 = vmatpush.xpose.msra.mxu0 0.0
    %1405 = vmatpush.xpose.msra.mxu0 0.0
    %1406 = vmatpush.xpose.msra.mxu0 0.0
    %1407 = vmatpush.xpose.msra.mxu0 %v1390
    %1408 = vmatmul.f32.gmra.mxu0 %v1388
    %v1409 = vpop.f32.mrf.mxu0
    %v1410 = vadd.f32 0.0, %v1409
    %1411 = vdwg.mxu0
    %v1412 = vmul.f32 %v1382, 0.25
    %v1413 = vmul.f32 %v1410, 0.25
    %v1414 = vsel %vm273, %v1412, -inf
    %1415 = vmax.xlane.f32.xlu0 %v1414
    %v1416 = vpop.xlane.xlu0 %1415
    %v1417 = vsel %vm273, %v1413, -inf
    %1418 = vmax.xlane.f32.xlu0 %v1417
    %v1419 = vpop.xlane.xlu0 %1418
    %v1420 = vsub.f32 %v1412, %v1416
    %v1421 = vsub.f32 %v1413, %v1419
    %v1422 = vmul.f32 %v1420, 1.442695
    %v1423 = vpow.pop %v1422
    %v1424 = vmul.f32 %v1421, 1.442695
    %v1425 = vpow.pop %v1424
    %v1426 = vsel %vm273, %v1423, 0.0
    %1427 = vadd.xlane.f32.xlu0 %v1426
    %v1428 = vpop.xlane.xlu0 %1427
    %v1429 = vsel %vm273, %v1425, 0.0
    %1430 = vadd.xlane.f32.xlu0 %v1429
    %v1431 = vpop.xlane.xlu0 %1430
    %v1432 = vrcp.pop %v1428
    %v1433 = vrcp.pop %v1431
    %v1434 = vmul.f32 %v1423, %v1432
    %v1435 = vmul.f32 %v1425, %v1433
    %1436 = vrot.lane.b32.xlu0 %v1093, 96
    %v1437 = vpop.permute.xlu0 %1436
    %v1440 = vsel %vm273, %v1434, 0
    %1442 = vmatpush.msra.mxu0 0.0
    %1443 = vmatpush.msra.mxu0 0.0
    %1444 = vmatpush.msra.mxu0 0.0
    %1445 = vmatpush.msra.mxu0 0.0
    %1446 = vmatpush.msra.mxu0 0.0
    %1447 = vmatpush.msra.mxu0 0.0
    %1448 = vmatpush.msra.mxu0 0.0
    %1449 = vmatpush.msra.mxu0 0.0
    %1450 = vmatpush.msra.mxu0 0.0
    %1451 = vmatpush.msra.mxu0 0.0
    %1452 = vmatpush.msra.mxu0 0.0
    %1453 = vmatpush.msra.mxu0 0.0
    %1454 = vmatpush.msra.mxu0 0.0
    %1455 = vmatpush.msra.mxu0 0.0
    %1456 = vmatpush.msra.mxu0 0.0
    %1457 = vmatpush.msra.mxu0 %v1437
    %1458 = vmatmul.f32.gmra.mxu0 %v1440
    %v1459 = vpop.f32.mrf.mxu0
    %v1460 = vadd.f32 0.0, %v1459
    %1461 = vdwg.mxu0
    %1462 = vrot.lane.b32.xlu0 %v1096, 96
    %v1463 = vpop.permute.xlu0 %1462
    %v1466 = vsel %vm273, %v1435, 0
    %1468 = vmatpush.msra.mxu0 0.0
    %1469 = vmatpush.msra.mxu0 0.0
    %1470 = vmatpush.msra.mxu0 0.0
    %1471 = vmatpush.msra.mxu0 0.0
    %1472 = vmatpush.msra.mxu0 0.0
    %1473 = vmatpush.msra.mxu0 0.0
    %1474 = vmatpush.msra.mxu0 0.0
    %1475 = vmatpush.msra.mxu0 0.0
    %1476 = vmatpush.msra.mxu0 0.0
    %1477 = vmatpush.msra.mxu0 0.0
    %1478 = vmatpush.msra.mxu0 0.0
    %1479 = vmatpush.msra.mxu0 0.0
    %1480 = vmatpush.msra.mxu0 0.0
    %1481 = vmatpush.msra.mxu0 0.0
    %1482 = vmatpush.msra.mxu0 0.0
    %1483 = vmatpush.msra.mxu0 %v1463
    %1484 = vmatmul.f32.gmra.mxu0 %v1466
    %v1485 = vpop.f32.mrf.mxu0
    %v1486 = vadd.f32 0.0, %v1485
    %1487 = vdwg.mxu0
    %1488 = vrot.lane.b32.xlu0 %v1070, 80
    %v1489 = vpop.permute.xlu0 %1488
    %1490 = vrot.lane.b32.xlu0 %v1070, 16
    %v1491 = vpop.permute.xlu0 %1490
    %v1492 = vsel %vm219, %v1489, 0
    %v1494 = vsel %vm219, %v1491, 0
    %1496 = vmatpush.xpose.msra.mxu0 0.0
    %1497 = vmatpush.xpose.msra.mxu0 0.0
    %1498 = vmatpush.xpose.msra.mxu0 0.0
    %1499 = vmatpush.xpose.msra.mxu0 0.0
    %1500 = vmatpush.xpose.msra.mxu0 0.0
    %1501 = vmatpush.xpose.msra.mxu0 0.0
    %1502 = vmatpush.xpose.msra.mxu0 0.0
    %1503 = vmatpush.xpose.msra.mxu0 0.0
    %1504 = vmatpush.xpose.msra.mxu0 0.0
    %1505 = vmatpush.xpose.msra.mxu0 0.0
    %1506 = vmatpush.xpose.msra.mxu0 0.0
    %1507 = vmatpush.xpose.msra.mxu0 0.0
    %1508 = vmatpush.xpose.msra.mxu0 0.0
    %1509 = vmatpush.xpose.msra.mxu0 0.0
    %1510 = vmatpush.xpose.msra.mxu0 0.0
    %1511 = vmatpush.xpose.msra.mxu0 %v1494
    %1512 = vmatmul.f32.gmra.mxu0 %v1492
    %v1513 = vpop.f32.mrf.mxu0
    %v1514 = vadd.f32 0.0, %v1513
    %1515 = vdwg.mxu0
    %1516 = vrot.lane.b32.xlu0 %v1073, 80
    %v1517 = vpop.permute.xlu0 %1516
    %1518 = vrot.lane.b32.xlu0 %v1073, 16
    %v1519 = vpop.permute.xlu0 %1518
    %v1520 = vsel %vm219, %v1517, 0
    %v1522 = vsel %vm219, %v1519, 0
    %1524 = vmatpush.xpose.msra.mxu0 0.0
    %1525 = vmatpush.xpose.msra.mxu0 0.0
    %1526 = vmatpush.xpose.msra.mxu0 0.0
    %1527 = vmatpush.xpose.msra.mxu0 0.0
    %1528 = vmatpush.xpose.msra.mxu0 0.0
    %1529 = vmatpush.xpose.msra.mxu0 0.0
    %1530 = vmatpush.xpose.msra.mxu0 0.0
    %1531 = vmatpush.xpose.msra.mxu0 0.0
    %1532 = vmatpush.xpose.msra.mxu0 0.0
    %1533 = vmatpush.xpose.msra.mxu0 0.0
    %1534 = vmatpush.xpose.msra.mxu0 0.0
    %1535 = vmatpush.xpose.msra.mxu0 0.0
    %1536 = vmatpush.xpose.msra.mxu0 0.0
    %1537 = vmatpush.xpose.msra.mxu0 0.0
    %1538 = vmatpush.xpose.msra.mxu0 0.0
    %1539 = vmatpush.xpose.msra.mxu0 %v1522
    %1540 = vmatmul.f32.gmra.mxu0 %v1520
    %v1541 = vpop.f32.mrf.mxu0
    %v1542 = vadd.f32 0.0, %v1541
    %1543 = vdwg.mxu0
    %v1544 = vmul.f32 %v1514, 0.25
    %v1545 = vmul.f32 %v1542, 0.25
    %v1546 = vsel %vm273, %v1544, -inf
    %1547 = vmax.xlane.f32.xlu0 %v1546
    %v1548 = vpop.xlane.xlu0 %1547
    %v1549 = vsel %vm273, %v1545, -inf
    %1550 = vmax.xlane.f32.xlu0 %v1549
    %v1551 = vpop.xlane.xlu0 %1550
    %v1552 = vsub.f32 %v1544, %v1548
    %v1553 = vsub.f32 %v1545, %v1551
    %v1554 = vmul.f32 %v1552, 1.442695
    %v1555 = vpow.pop %v1554
    %v1556 = vmul.f32 %v1553, 1.442695
    %v1557 = vpow.pop %v1556
    %v1558 = vsel %vm273, %v1555, 0.0
    %1559 = vadd.xlane.f32.xlu0 %v1558
    %v1560 = vpop.xlane.xlu0 %1559
    %v1561 = vsel %vm273, %v1557, 0.0
    %1562 = vadd.xlane.f32.xlu0 %v1561
    %v1563 = vpop.xlane.xlu0 %1562
    %v1564 = vrcp.pop %v1560
    %v1565 = vrcp.pop %v1563
    %v1566 = vmul.f32 %v1555, %v1564
    %v1567 = vmul.f32 %v1557, %v1565
    %1568 = vrot.lane.b32.xlu0 %v1093, 80
    %v1569 = vpop.permute.xlu0 %1568
    %v1572 = vsel %vm273, %v1566, 0
    %1574 = vmatpush.msra.mxu0 0.0
    %1575 = vmatpush.msra.mxu0 0.0
    %1576 = vmatpush.msra.mxu0 0.0
    %1577 = vmatpush.msra.mxu0 0.0
    %1578 = vmatpush.msra.mxu0 0.0
    %1579 = vmatpush.msra.mxu0 0.0
    %1580 = vmatpush.msra.mxu0 0.0
    %1581 = vmatpush.msra.mxu0 0.0
    %1582 = vmatpush.msra.mxu0 0.0
    %1583 = vmatpush.msra.mxu0 0.0
    %1584 = vmatpush.msra.mxu0 0.0
    %1585 = vmatpush.msra.mxu0 0.0
    %1586 = vmatpush.msra.mxu0 0.0
    %1587 = vmatpush.msra.mxu0 0.0
    %1588 = vmatpush.msra.mxu0 0.0
    %1589 = vmatpush.msra.mxu0 %v1569
    %1590 = vmatmul.f32.gmra.mxu0 %v1572
    %v1591 = vpop.f32.mrf.mxu0
    %v1592 = vadd.f32 0.0, %v1591
    %1593 = vdwg.mxu0
    %1594 = vrot.lane.b32.xlu0 %v1096, 80
    %v1595 = vpop.permute.xlu0 %1594
    %v1598 = vsel %vm273, %v1567, 0
    %1600 = vmatpush.msra.mxu0 0.0
    %1601 = vmatpush.msra.mxu0 0.0
    %1602 = vmatpush.msra.mxu0 0.0
    %1603 = vmatpush.msra.mxu0 0.0
    %1604 = vmatpush.msra.mxu0 0.0
    %1605 = vmatpush.msra.mxu0 0.0
    %1606 = vmatpush.msra.mxu0 0.0
    %1607 = vmatpush.msra.mxu0 0.0
    %1608 = vmatpush.msra.mxu0 0.0
    %1609 = vmatpush.msra.mxu0 0.0
    %1610 = vmatpush.msra.mxu0 0.0
    %1611 = vmatpush.msra.mxu0 0.0
    %1612 = vmatpush.msra.mxu0 0.0
    %1613 = vmatpush.msra.mxu0 0.0
    %1614 = vmatpush.msra.mxu0 0.0
    %1615 = vmatpush.msra.mxu0 %v1595
    %1616 = vmatmul.f32.gmra.mxu0 %v1598
    %v1617 = vpop.f32.mrf.mxu0
    %v1618 = vadd.f32 0.0, %v1617
    %1619 = vdwg.mxu0
    %1622 = vrot.lane.b32.xlu0 %v1327, 16
    %v1623 = vpop.permute.xlu0 %1622
    %1624 = vrot.lane.b32.xlu0 %v1354, 16
    %v1625 = vpop.permute.xlu0 %1624
    %1630 = vrot.lane.b32.xlu0 %v1460, 32
    %v1631 = vpop.permute.xlu0 %1630
    %1632 = vrot.lane.b32.xlu0 %v1486, 32
    %v1633 = vpop.permute.xlu0 %1632
    %1638 = vrot.lane.b32.xlu0 %v1592, 48
    %v1639 = vpop.permute.xlu0 %1638
    %1640 = vrot.lane.b32.xlu0 %v1618, 48
    %v1641 = vpop.permute.xlu0 %1640
    %v1644 = vsel %vm219, %v1197, %v1623
    %v1645 = vsel %vm219, %v1220, %v1625
    %v1646 = vsel %vm766, %v1644, %v1631
    %v1647 = vsel %vm766, %v1645, %v1633
    %v1648 = vsel %vm769, %v1646, %v1639
    %v1649 = vsel %vm769, %v1647, %v1641
    %s1650 = scalar_lea.vmem %s3, 64
    %v1651 = vld [vmem:[%s1650] sm:$0xff]
    %v1652 = vld [vmem:[%s1650 + $0x8] sm:$0xff]
    %v1653 = vld [vmem:[%s1650 + $0x10] sm:$0xff]
    %v1654 = vld [vmem:[%s1650 + $0x18] sm:$0xff]
    %v1655 = vld [vmem:[%s1650 + $0x20] sm:$0xff]
    %v1656 = vld [vmem:[%s1650 + $0x28] sm:$0xff]
    %v1657 = vld [vmem:[%s1650 + $0x30] sm:$0xff]
    %v1658 = vld [vmem:[%s1650 + $0x38] sm:$0xff]
    %s1659 = scalar_lea.vmem [#allocation7], 1
    %v1660 = vld [vmem:[%s1659] sm:$0x1]
    %v1662 = vperm.slane %v1660, 0
    %v1665 = vsel %vm163, %v1648, 0
    %v1668 = vsel %vm163, %v1649, 0
    %1670 = vmatpush.msra.mxu0 0.0
    %1671 = vmatpush.msra.mxu0 0.0
    %1672 = vmatpush.msra.mxu0 0.0
    %1673 = vmatpush.msra.mxu0 0.0
    %1674 = vmatpush.msra.mxu0 0.0
    %1675 = vmatpush.msra.mxu0 0.0
    %1676 = vmatpush.msra.mxu0 0.0
    %1677 = vmatpush.msra.mxu0 0.0
    %1678 = vmatpush.msra.mxu0 %v1658
    %1679 = vmatpush.msra.mxu0 %v1657
    %1680 = vmatpush.msra.mxu0 %v1656
    %1681 = vmatpush.msra.mxu0 %v1655
    %1682 = vmatpush.msra.mxu0 %v1654
    %1683 = vmatpush.msra.mxu0 %v1653
    %1684 = vmatpush.msra.mxu0 %v1652
    %1685 = vmatpush.msra.mxu0 %v1651
    %1686 = vmatmul.f32.gmra.mxu0 %v1665
    %v1687 = vpop.f32.mrf.mxu0
    %v1688 = vadd.f32 %v1662, %v1687
    %1689 = vmatmul.f32.gmra.mxu0 %v1668
    %v1690 = vpop.f32.mrf.mxu0
    %v1691 = vadd.f32 %v1662, %v1690
    %1692 = vdwg.mxu0
    %v1693 = vadd.f32 %v1020, %v1688
    %v1694 = vadd.f32 %v1021, %v1691
    %s1695 = scalar_lea.vmem [#allocation10], 1
    %v1696 = vld [vmem:[%s1695] sm:$0x1]
    %s1697 = scalar_lea.vmem %s10, 1
    %v1698 = vld [vmem:[%s1697] sm:$0x1]
    %v1699 = vsel %vm163, %v1693, 0.0
    %1700 = vadd.xlane.f32.xlu0 %v1699
    %v1701 = vpop.xlane.xlu0 %1700
    %v1702 = vsel %vm163, %v1694, 0.0
    %1703 = vadd.xlane.f32.xlu0 %v1702
    %v1704 = vpop.xlane.xlu0 %1703
    %v1705 = vmul.f32 %v1701, %v829
    %v1706 = vmul.f32 %v1704, %v829
    %v1707 = vsub.f32 %v1693, %v1705
    %v1708 = vsub.f32 %v1694, %v1706
    %v1709 = vmul.f32 %v1707, %v1707
    %v1710 = vmul.f32 %v1708, %v1708
    %v1711 = vsel %vm163, %v1709, 0.0
    %1712 = vadd.xlane.f32.xlu0 %v1711
    %v1713 = vpop.xlane.xlu0 %1712
    %v1714 = vsel %vm163, %v1710, 0.0
    %1715 = vadd.xlane.f32.xlu0 %v1714
    %v1716 = vpop.xlane.xlu0 %1715
    %v1717 = vmul.f32 %v1713, %v829
    %v1718 = vmul.f32 %v1716, %v829
    %v1719 = vadd.f32 %v1717, 1e-05
    %v1720 = vadd.f32 %v1718, 1e-05
    %v1721 = vrsqrt.pop %v1719
    %v1722 = vmul.f32 %v1721, %v1719
    %v1723 = vmul.f32 %v1722, %v1721
    %v1724 = vmul.f32 0.5, %v1723
    %v1725 = vsub.f32 1.5, %v1724
    %v1726 = vmul.f32 %v1721, %v1725
    %vm1727 = vweird.f32 %v1719
    %vm1728 = vweird.f32 %v1721
    %vm1729 = vmor %vm1727, %vm1728
    %v1730 = vsel %vm1729, %v1721, %v1726
    %v1731 = vrsqrt.pop %v1720
    %v1732 = vmul.f32 %v1731, %v1720
    %v1733 = vmul.f32 %v1732, %v1731
    %v1734 = vmul.f32 0.5, %v1733
    %v1735 = vsub.f32 1.5, %v1734
    %v1736 = vmul.f32 %v1731, %v1735
    %vm1737 = vweird.f32 %v1720
    %vm1738 = vweird.f32 %v1731
    %vm1739 = vmor %vm1737, %vm1738
    %v1740 = vsel %vm1739, %v1731, %v1736
    %v1741 = vmul.f32 %v1707, %v1730
    %v1742 = vmul.f32 %v1708, %v1740
    %v1744 = vperm.slane %v1696, 0
    %v1746 = vmul.f32 %v1741, %v1744
    %v1747 = vmul.f32 %v1742, %v1744
    %v1749 = vperm.slane %v1698, 0
    %v1751 = vadd.f32 %v1746, %v1749
    %v1752 = vadd.f32 %v1747, %v1749
    %s1753 = scalar_lea.vmem [#allocation8], 64
    %v1754 = vld [vmem:[%s1753] sm:$0xff]
    %v1755 = vld [vmem:[%s1753 + $0x8] sm:$0xff]
    %v1756 = vld [vmem:[%s1753 + $0x10] sm:$0xff]
    %v1757 = vld [vmem:[%s1753 + $0x18] sm:$0xff]
    %v1758 = vld [vmem:[%s1753 + $0x20] sm:$0xff]
    %v1759 = vld [vmem:[%s1753 + $0x28] sm:$0xff]
    %v1760 = vld [vmem:[%s1753 + $0x30] sm:$0xff]
    %v1761 = vld [vmem:[%s1753 + $0x38] sm:$0xff]
    %s1762 = scalar_lea.vmem %s6, 1
    %v1763 = vld [vmem:[%s1762] sm:$0x1]
    %v1765 = vperm.slane %v1763, 0
    %v1768 = vsel %vm163, %v1751, 0
    %v1771 = vsel %vm163, %v1752, 0
    %1773 = vmatpush.msra.mxu0 0.0
    %1774 = vmatpush.msra.mxu0 0.0
    %1775 = vmatpush.msra.mxu0 0.0
    %1776 = vmatpush.msra.mxu0 0.0
    %1777 = vmatpush.msra.mxu0 0.0
    %1778 = vmatpush.msra.mxu0 0.0
    %1779 = vmatpush.msra.mxu0 0.0
    %1780 = vmatpush.msra.mxu0 0.0
    %1781 = vmatpush.msra.mxu0 %v1761
    %1782 = vmatpush.msra.mxu0 %v1760
    %1783 = vmatpush.msra.mxu0 %v1759
    %1784 = vmatpush.msra.mxu0 %v1758
    %1785 = vmatpush.msra.mxu0 %v1757
    %1786 = vmatpush.msra.mxu0 %v1756
    %1787 = vmatpush.msra.mxu0 %v1755
    %1788 = vmatpush.msra.mxu0 %v1754
    %1789 = vmatmul.f32.gmra.mxu0 %v1768
    %v1790 = vpop.f32.mrf.mxu0
    %v1791 = vadd.f32 %v1765, %v1790
    %1792 = vmatmul.f32.gmra.mxu0 %v1771
    %v1793 = vpop.f32.mrf.mxu0
    %v1794 = vadd.f32 %v1765, %v1793
    %1795 = vdwg.mxu0
    %v1796 = vmax.f32 %v1791, 0.0
    %v1797 = vmax.f32 %v1794, 0.0
    %s1798 = scalar_lea.vmem %s7, 128
    %v1799 = vld [vmem:[%s1798] sm:$0xff]
    %v1800 = vld [vmem:[%s1798 + $0x8] sm:$0xff]
    %v1801 = vld [vmem:[%s1798 + $0x10] sm:$0xff]
    %v1802 = vld [vmem:[%s1798 + $0x18] sm:$0xff]
    %v1803 = vld [vmem:[%s1798 + $0x20] sm:$0xff]
    %v1804 = vld [vmem:[%s1798 + $0x28] sm:$0xff]
    %v1805 = vld [vmem:[%s1798 + $0x30] sm:$0xff]
    %v1806 = vld [vmem:[%s1798 + $0x38] sm:$0xff]
    %v1807 = vld [vmem:[%s1798 + $0x40] sm:$0xff]
    %v1808 = vld [vmem:[%s1798 + $0x48] sm:$0xff]
    %v1809 = vld [vmem:[%s1798 + $0x50] sm:$0xff]
    %v1810 = vld [vmem:[%s1798 + $0x58] sm:$0xff]
    %v1811 = vld [vmem:[%s1798 + $0x60] sm:$0xff]
    %v1812 = vld [vmem:[%s1798 + $0x68] sm:$0xff]
    %v1813 = vld [vmem:[%s1798 + $0x70] sm:$0xff]
    %v1814 = vld [vmem:[%s1798 + $0x78] sm:$0xff]
    %s1815 = scalar_lea.vmem %s8, 1
    %v1816 = vld [vmem:[%s1815] sm:$0x1]
    %v1818 = vperm.slane %v1816, 0
    %1820 = vmatpush.msra.mxu0 %v1814
    %1821 = vmatpush.msra.mxu0 %v1813
    %1822 = vmatpush.msra.mxu0 %v1812
    %1823 = vmatpush.msra.mxu0 %v1811
    %1824 = vmatpush.msra.mxu0 %v1810
    %1825 = vmatpush.msra.mxu0 %v1809
    %1826 = vmatpush.msra.mxu0 %v1808
    %1827 = vmatpush.msra.mxu0 %v1807
    %1828 = vmatpush.msra.mxu0 %v1806
    %1829 = vmatpush.msra.mxu0 %v1805
    %1830 = vmatpush.msra.mxu0 %v1804
    %1831 = vmatpush.msra.mxu0 %v1803
    %1832 = vmatpush.msra.mxu0 %v1802
    %1833 = vmatpush.msra.mxu0 %v1801
    %1834 = vmatpush.msra.mxu0 %v1800
    %1835 = vmatpush.msra.mxu0 %v1799
    %1836 = vmatmul.f32.gmra.mxu0 %v1796
    %v1837 = vpop.f32.mrf.mxu0
    %v1838 = vadd.f32 %v1818, %v1837
    %1839 = vmatmul.f32.gmra.mxu0 %v1797
    %v1840 = vpop.f32.mrf.mxu0
    %v1841 = vadd.f32 %v1818, %v1840
    %1842 = vdwg.mxu0
    %v1843 = vadd.f32 %v1751, %v1838
    %v1844 = vadd.f32 %v1752, %v1841
    %s1845 = scalar_lea.vmem %s11, 1
    %v1846 = vld [vmem:[%s1845] sm:$0x1]
    %s1847 = scalar_lea.vmem [#allocation11], 1
    %v1848 = vld [vmem:[%s1847] sm:$0x1]
    %v1849 = vsel %vm163, %v1843, 0.0
    %1850 = vadd.xlane.f32.xlu0 %v1849
    %v1851 = vpop.xlane.xlu0 %1850
    %v1852 = vsel %vm163, %v1844, 0.0
    %1853 = vadd.xlane.f32.xlu0 %v1852
    %v1854 = vpop.xlane.xlu0 %1853
    %v1855 = vmul.f32 %v1851, %v829
    %v1856 = vmul.f32 %v1854, %v829
    %v1857 = vsub.f32 %v1843, %v1855
    %v1858 = vsub.f32 %v1844, %v1856
    %v1859 = vmul.f32 %v1857, %v1857
    %v1860 = vmul.f32 %v1858, %v1858
    %v1861 = vsel %vm163, %v1859, 0.0
    %1862 = vadd.xlane.f32.xlu0 %v1861
    %v1863 = vpop.xlane.xlu0 %1862
    %v1864 = vsel %vm163, %v1860, 0.0
    %1865 = vadd.xlane.f32.xlu0 %v1864
    %v1866 = vpop.xlane.xlu0 %1865
    %v1867 = vmul.f32 %v1863, %v829
    %v1868 = vmul.f32 %v1866, %v829
    %v1869 = vadd.f32 %v1867, 1e-05
    %v1870 = vadd.f32 %v1868, 1e-05
    %v1871 = vrsqrt.pop %v1869
    %v1872 = vmul.f32 %v1871, %v1869
    %v1873 = vmul.f32 %v1872, %v1871
    %v1874 = vmul.f32 0.5, %v1873
    %v1875 = vsub.f32 1.5, %v1874
    %v1876 = vmul.f32 %v1871, %v1875
    %vm1877 = vweird.f32 %v1869
    %vm1878 = vweird.f32 %v1871
    %vm1879 = vmor %vm1877, %vm1878
    %v1880 = vsel %vm1879, %v1871, %v1876
    %v1881 = vrsqrt.pop %v1870
    %v1882 = vmul.f32 %v1881, %v1870
    %v1883 = vmul.f32 %v1882, %v1881
    %v1884 = vmul.f32 0.5, %v1883
    %v1885 = vsub.f32 1.5, %v1884
    %v1886 = vmul.f32 %v1881, %v1885
    %vm1887 = vweird.f32 %v1870
    %vm1888 = vweird.f32 %v1881
    %vm1889 = vmor %vm1887, %vm1888
    %v1890 = vsel %vm1889, %v1881, %v1886
    %v1891 = vmul.f32 %v1857, %v1880
    %v1892 = vmul.f32 %v1858, %v1890
    %v1894 = vperm.slane %v1846, 0
    %v1896 = vmul.f32 %v1891, %v1894
    %v1897 = vmul.f32 %v1892, %v1894
    %v1899 = vperm.slane %v1848, 0
    %v1901 = vadd.f32 %v1896, %v1899
    %v1902 = vadd.f32 %v1897, %v1899
    %v1905 = vrot.slane %v1902, 7
    %vm1908 = vcmask 523271
    %1909 = vst.msk [vmem:[#allocation13 - $0x7] sm:$0x80] %vm1908, %v1901
    %vm1910 = vcmask 516096
    %1911 = vst.msk [vmem:[#allocation13 + $0x1] sm:$0x1] %vm1910, %v1905
    // Predicated region
    $region78: #{tpu_custom_call.1} parent=1 // pred_check
      _
    $region79: #{tpu_custom_call.1} parent=1 // pred_check_branch
      %1913 = sbr.rel (0) target = $region81
    $region80: #{tpu_custom_call.1} parent=1 // pred_region
      %1915 = vsyncadd [#allocation4], 0
      %s1917 = sshll.u32 [#allocation13], 4
      %s1918 = int_to_ptr.vmem [resolvable:$true] %s1917
      %s1919 = sshll.u32 %s13, 4
      %s1920 = int_to_ptr.hbm [resolvable:$true] %s1919
      %1922 = dma.vmem_to_hbm [thread:$0]  %s1918, 32, %s1920, [#allocation4]
    $region81: #{tpu_custom_call.1} parent=1 // pred_fallthru
      _
    // Predicated region
    $region82: #{tpu_custom_call.1} parent=1 // pred_check
      _
    $region83: #{tpu_custom_call.1} parent=1 // pred_check_branch
      %1924 = sbr.rel (0) target = $region85
    $region84: #{tpu_custom_call.1} parent=1 // pred_region
      %1926 = dma.done [#allocation4], 32
    $region85: #{tpu_custom_call.1} parent=1 // pred_fallthru
      _
    %1927 = vsyncpa [#allocation3], 1
    %1928 = vsyncpa [#allocation6], 1
    %1929 = vsyncpa [#allocation9], 1
    %1930 = vsyncpa [#allocation12], 1
    %1931 = vsyncpa [#allocation4], 1

</llo_original>
